<compile_context>
chip_gen: v6e
topology: v6e:2x2x1
jax: 0.10.0
libtpu: 0.0.40
codegen_flags: <defaults>
</compile_context>

<pallas_src>
import math

import jax
import jax.numpy as jnp
import numpy as np
from jax.experimental import pallas as pl
from jax.experimental.pallas import tpu as pltpu

# ---------------------------------------------------------------------------
# problem sizes (small, consistent with the module)
# ---------------------------------------------------------------------------
B = 2          # batch
S = 8          # seq length
E = 32         # embedding_dim
H = 4          # num_heads
DH = E // H    # head dim
EPS = 1e-5     # nn.LayerNorm default


# ---------------------------------------------------------------------------
# Pallas kernel: whole forward for the whole batch in one invocation.
# ---------------------------------------------------------------------------
def _cross_verse_kernel(
    x_ref,        # (B*S, E)     input embeddings, batch flattened into rows
    mask_ref,     # (B, S, S)    precomputed additive cross-verse mask
    wqkv_ref,     # (E+1, 3E)    rows 0:E = [Wq.T | Wk.T | Wv.T], row E = [bq|bk|bv]
    slab_ref,     # (2E+4, E)    rows 0:E = Wo.T, E:2E = Wproj.T,
                  #              2E:2E+4 = [bo, bproj, gamma, beta]
    o_ref,        # (B*S, E)
):
    x = x_ref[...]                                          # [B*S, E]

    # ---- fused QKV projection for the whole batch (bias = extra weight row)
    qkv = (
        jnp.dot(x, wqkv_ref[0:E, :], preferred_element_type=jnp.float32)
        + wqkv_ref[E:E + 1, :]
    )                                                       # [B*S, 3E]

    # ---- hoisted softmax scale: scale q once for the whole batch ----------
    scale = 1.0 / math.sqrt(DH)
    q_all = qkv[:, 0:E] * scale                             # [B*S, E]
    k_all = qkv[:, E:2 * E]                                 # [B*S, E]
    v_all = qkv[:, 2 * E:3 * E]                             # [B*S, E]

    outs = []
    for b in range(B):                                      # static -> unrolled
        rows = slice(b * S, (b + 1) * S)
        mask = mask_ref[b]                                  # [S, S] additive mask
        acc = None
        for h in range(H):                                  # static -> unrolled
            cols = slice(h * DH, (h + 1) * DH)
            qh = q_all[rows, cols]                          # [S, DH]
            kh = k_all[rows, cols]                          # [S, DH]
            vh = v_all[rows, cols]                          # [S, DH]

            scores = jax.lax.dot_general(
                qh, kh, (((1,), (1,)), ((), ())),
                preferred_element_type=jnp.float32,
            ) + mask                                        # [S, S]
            scores = scores - jnp.max(scores, axis=-1, keepdims=True)
            p = jnp.exp(scores)
            p = p * pl.reciprocal(jnp.sum(p, axis=-1, keepdims=True))  # exact
            head = jnp.dot(p, vh, preferred_element_type=jnp.float32)  # [S, DH]

            # per-head output projection accumulate (sublane-aligned Wo.T rows)
            contrib = jnp.dot(
                head, slab_ref[h * DH:(h + 1) * DH, :],
                preferred_element_type=jnp.float32,
            )                                               # [S, E]
            acc = contrib if acc is None else acc + contrib
        outs.append(acc)                                    # [S, E] == attn_b @ Wo.T

    attn_proj = jnp.concatenate(outs, axis=0)               # [B*S, E]

    # ---- MHA output bias, residual projection, LayerNorm --------------------
    wp = slab_ref[E:2 * E, :]                               # [E, E]  (Wproj.T)
    misc = slab_ref[2 * E:2 * E + 4, :]                     # [4, E]
    bo = misc[0:1, :]
    bp = misc[1:2, :]
    gamma = misc[2:3, :]
    beta = misc[3:4, :]

    mha = attn_proj + bo
    y = x + jnp.dot(mha, wp, preferred_element_type=jnp.float32) + bp

    mu = jnp.mean(y, axis=-1, keepdims=True)
    var = jnp.mean((y - mu) ** 2, axis=-1, keepdims=True)
    yn = (y - mu) * jax.lax.rsqrt(var + EPS)
    o_ref[...] = yn * gamma + beta


# ---------------------------------------------------------------------------
# wrapper
# ---------------------------------------------------------------------------
def _create_cross_verse_mask(verse_positions):
    """Vectorized equivalent of the module's _create_cross_verse_mask."""
    vp = verse_positions.astype(jnp.float32)
    vi = vp[:, :, None]                                     # [B, S, 1]
    vj = vp[:, None, :]                                     # [B, 1, S]
    diff = jnp.abs(vi - vj)
    either_zero = jnp.logical_or(vi == 0.0, vj == 0.0)
    base = jnp.where(
        diff == 0.0, 1.0,
        jnp.where(diff == 1.0, 0.7, 0.3 / jnp.maximum(diff, 1.0)),
    )
    return jnp.where(either_zero, 1.0, base)                # [B, S, S]


def cross_verse_attention(x, verse_positions, params):
    """x: [B,S,E] f32, verse_positions: [B,S] int32."""
    # TODO(synk): the attention_mask branch in the original module produces a
    # shape-invalid [B,B,S,S] mask for nn.MultiheadAttention via broadcasting;
    # only the attention_mask=None path is implemented.
    mask = _create_cross_verse_mask(verse_positions)        # [B, S, S]
    x2d = x.reshape(B * S, E)                               # batch b -> rows b*S..b*S+S

    vmem = lambda: pl.BlockSpec(memory_space=pltpu.MemorySpace.VMEM)

    out2d = pl.pallas_call(
        _cross_verse_kernel,
        out_shape=jax.ShapeDtypeStruct((B * S, E), jnp.float32),
        in_specs=[vmem(), vmem(), vmem(), vmem()],
        out_specs=vmem(),
    )(x2d, mask, params["wqkv"], params["slab"])
    return out2d.reshape(B, S, E)


# ---------------------------------------------------------------------------
# pure-JAX reference (mirrors the torch module semantics, packed params)
# ---------------------------------------------------------------------------
def reference(x, verse_positions, p):
    mask = _create_cross_verse_mask(verse_positions)        # [B, S, S]

    wqkv_t = p["wqkv"][0:E, :]                              # [E, 3E]
    bqkv = p["wqkv"][E, :]                                  # [3E]
    qkv = x @ wqkv_t + bqkv                                 # [B, S, 3E]
    q, k, v = jnp.split(qkv, 3, axis=-1)

    def heads(t):
        return t.reshape(B, S, H, DH).transpose(0, 2, 1, 3)  # [B, H, S, DH]

    qh, kh, vh = heads(q), heads(k), heads(v)
    scores = jnp.einsum("bhsd,bhtd->bhst", qh, kh) / math.sqrt(DH)
    scores = scores + mask[:, None]                         # additive float mask
    pr = jax.nn.softmax(scores, axis=-1)
    out = jnp.einsum("bhst,bhtd->bhsd", pr, vh)
    out = out.transpose(0, 2, 1, 3).reshape(B, S, E)

    wo_t = p["slab"][0:E, :]
    wp_t = p["slab"][E:2 * E, :]
    bo = p["slab"][2 * E]
    bp = p["slab"][2 * E + 1]
    gamma = p["slab"][2 * E + 2]
    beta = p["slab"][2 * E + 3]

    mha = out @ wo_t + bo
    y = x + (mha @ wp_t + bp)
    mu = jnp.mean(y, axis=-1, keepdims=True)
    var = jnp.mean((y - mu) ** 2, axis=-1, keepdims=True)
    return (y - mu) / jnp.sqrt(var + EPS) * gamma + beta


# ---------------------------------------------------------------------------
# deterministic parameter init (packed layout) + run
# ---------------------------------------------------------------------------
def make_params(key):
    ks = jax.random.split(key, 8)
    s = 1.0 / math.sqrt(E)
    # torch layout W is [out, in]; kernel consumes W.T -> generate W then transpose
    wq = jax.random.uniform(ks[0], (E, E), jnp.float32, -s, s)
    wk = jax.random.uniform(ks[1], (E, E), jnp.float32, -s, s)
    wv = jax.random.uniform(ks[2], (E, E), jnp.float32, -s, s)
    wo = jax.random.uniform(ks[3], (E, E), jnp.float32, -s, s)
    wp = jax.random.uniform(ks[4], (E, E), jnp.float32, -s, s)
    bq = jax.random.uniform(ks[5], (E,), jnp.float32, -s, s)
    bk = jax.random.uniform(ks[6], (E,), jnp.float32, -s, s)
    bv = jax.random.uniform(ks[7], (E,), jnp.float32, -s, s)
    bo = jnp.zeros((E,), jnp.float32)
    bp = jnp.full((E,), 0.01, jnp.float32)
    gamma = jnp.ones((E,), jnp.float32)
    beta = jnp.zeros((E,), jnp.float32)

    wqkv = jnp.concatenate(
        [
            jnp.concatenate([wq.T, wk.T, wv.T], axis=1),          # [E, 3E]
            jnp.concatenate([bq, bk, bv]).reshape(1, 3 * E),      # [1, 3E]
        ],
        axis=0,
    )                                                             # [E+1, 3E]
    slab = jnp.concatenate(
        [wo.T, wp.T, jnp.stack([bo, bp, gamma, beta], axis=0)],
        axis=0,
    )                                                             # [2E+4, E]
    return {"wqkv": wqkv, "slab": slab}


if __name__ == "__main__":
    key = jax.random.PRNGKey(0)
    kx, kv, kp = jax.random.split(key, 3)

    x = jax.random.normal(kx, (B, S, E), jnp.float32)
    # verse positions in [0, 4): includes 0 to exercise the "skip" branch
    verse_positions = jax.random.randint(kv, (B, S), 0, 4, jnp.int32)
    params = make_params(kp)

    out = cross_verse_attention(x, verse_positions, params)
    out = jax.block_until_ready(out)

    ref = reference(x, verse_positions, params)
    np.testing.assert_allclose(np.asarray(out), np.asarray(ref), rtol=2e-4, atol=2e-4)

    print("KERNEL_OK")
</pallas_src>

<mosaic_0001>
module attributes {stable_mosaic.version = 11 : i64} {
  func.func @_cross_verse_kernel(%arg0: memref<16x32xf32, #tpu.memory_space<vmem>>, %arg1: memref<2x8x8xf32, #tpu.memory_space<vmem>>, %arg2: memref<33x96xf32, #tpu.memory_space<vmem>>, %arg3: memref<68x32xf32, #tpu.memory_space<vmem>>, %arg4: memref<16x32xf32, #tpu.memory_space<vmem>>) attributes {dimension_semantics = [], scalar_prefetch = 0 : i64, scratch_operands = 0 : i64, tpu.core_type = #tpu.core_type<tc>} {
    %c0 = arith.constant 0 : index
    %c0_0 = arith.constant 0 : index
    %0 = vector.load %arg0[%c0, %c0_0] : memref<16x32xf32, #tpu.memory_space<vmem>>, vector<16x32xf32>
    %c0_1 = arith.constant 0 : index
    %c0_2 = arith.constant 0 : index
    %1 = vector.load %arg2[%c0_1, %c0_2] : memref<33x96xf32, #tpu.memory_space<vmem>>, vector<32x96xf32>
    %cst = arith.constant dense<0.000000e+00> : vector<16x96xf32>
    %2 = tpu.matmul %0, %1, %cst {dimension_numbers = #tpu.dot_dimension_numbers<[1], [0], [0], [1], [0, 0, 1, 1], [], []>} : vector<16x32xf32>, vector<32x96xf32>, vector<16x96xf32> -> vector<16x96xf32>
    %c32 = arith.constant 32 : index
    %c0_3 = arith.constant 0 : index
    %3 = vector.load %arg2[%c32, %c0_3] : memref<33x96xf32, #tpu.memory_space<vmem>>, vector<1x96xf32>
    %4 = vector.broadcast %3 : vector<1x96xf32> to vector<16x96xf32>
    %5 = arith.addf %2, %4 : vector<16x96xf32>
    %6 = vector.extract_strided_slice %5 {offsets = [0, 0], sizes = [16, 32], strides = [1, 1]} : vector<16x96xf32> to vector<16x32xf32>
    %cst_4 = arith.constant 0.353553385 : f32
    %7 = vector.broadcast %cst_4 : f32 to vector<16x32xf32>
    %8 = arith.mulf %6, %7 : vector<16x32xf32>
    %9 = vector.extract_strided_slice %5 {offsets = [0, 32], sizes = [16, 32], strides = [1, 1]} : vector<16x96xf32> to vector<16x32xf32>
    %10 = vector.extract_strided_slice %5 {offsets = [0, 64], sizes = [16, 32], strides = [1, 1]} : vector<16x96xf32> to vector<16x32xf32>
    %c0_5 = arith.constant 0 : index
    %c0_6 = arith.constant 0 : index
    %c0_7 = arith.constant 0 : index
    %11 = vector.load %arg1[%c0_5, %c0_6, %c0_7] : memref<2x8x8xf32, #tpu.memory_space<vmem>>, vector<1x8x8xf32>
    %12 = vector.shape_cast %11 : vector<1x8x8xf32> to vector<8x8xf32>
    %13 = vector.extract_strided_slice %8 {offsets = [0, 0], sizes = [8, 8], strides = [1, 1]} : vector<16x32xf32> to vector<8x8xf32>
    %14 = vector.extract_strided_slice %9 {offsets = [0, 0], sizes = [8, 8], strides = [1, 1]} : vector<16x32xf32> to vector<8x8xf32>
    %15 = vector.extract_strided_slice %10 {offsets = [0, 0], sizes = [8, 8], strides = [1, 1]} : vector<16x32xf32> to vector<8x8xf32>
    %cst_8 = arith.constant dense<0.000000e+00> : vector<8x8xf32>
    %16 = tpu.matmul %13, %14, %cst_8 {dimension_numbers = #tpu.dot_dimension_numbers<[1], [1], [0], [0], [0, 0, 1, 0], [], []>} : vector<8x8xf32>, vector<8x8xf32>, vector<8x8xf32> -> vector<8x8xf32>
    %17 = arith.addf %16, %12 : vector<8x8xf32>
    %cst_9 = arith.constant dense<0xFF800000> : vector<8xf32>
    %18 = vector.multi_reduction <maximumf>, %17, %cst_9 [1] : vector<8x8xf32> to vector<8xf32>
    %19 = vector.shape_cast %18 : vector<8xf32> to vector<8x1xf32>
    %20 = vector.broadcast %19 : vector<8x1xf32> to vector<8x8xf32>
    %21 = arith.subf %17, %20 : vector<8x8xf32>
    %22 = math.exp %21 : vector<8x8xf32>
    %cst_10 = arith.constant dense<0.000000e+00> : vector<8xf32>
    %23 = vector.multi_reduction <add>, %22, %cst_10 [1] : vector<8x8xf32> to vector<8xf32>
    %24 = vector.shape_cast %23 : vector<8xf32> to vector<8x1xf32>
    %25 = tpu.reciprocal %24 : vector<8x1xf32> -> vector<8x1xf32>
    %26 = vector.broadcast %25 : vector<8x1xf32> to vector<8x8xf32>
    %27 = arith.mulf %22, %26 : vector<8x8xf32>
    %cst_11 = arith.constant dense<0.000000e+00> : vector<8x8xf32>
    %28 = tpu.matmul %27, %15, %cst_11 {dimension_numbers = #tpu.dot_dimension_numbers<[1], [0], [0], [1], [0, 0, 1, 1], [], []>} : vector<8x8xf32>, vector<8x8xf32>, vector<8x8xf32> -> vector<8x8xf32>
    %c0_12 = arith.constant 0 : index
    %c0_13 = arith.constant 0 : index
    %29 = vector.load %arg3[%c0_12, %c0_13] : memref<68x32xf32, #tpu.memory_space<vmem>>, vector<8x32xf32>
    %cst_14 = arith.constant dense<0.000000e+00> : vector<8x32xf32>
    %30 = tpu.matmul %28, %29, %cst_14 {dimension_numbers = #tpu.dot_dimension_numbers<[1], [0], [0], [1], [0, 0, 1, 1], [], []>} : vector<8x8xf32>, vector<8x32xf32>, vector<8x32xf32> -> vector<8x32xf32>
    %31 = vector.extract_strided_slice %8 {offsets = [0, 8], sizes = [8, 8], strides = [1, 1]} : vector<16x32xf32> to vector<8x8xf32>
    %32 = vector.extract_strided_slice %9 {offsets = [0, 8], sizes = [8, 8], strides = [1, 1]} : vector<16x32xf32> to vector<8x8xf32>
    %33 = vector.extract_strided_slice %10 {offsets = [0, 8], sizes = [8, 8], strides = [1, 1]} : vector<16x32xf32> to vector<8x8xf32>
    %cst_15 = arith.constant dense<0.000000e+00> : vector<8x8xf32>
    %34 = tpu.matmul %31, %32, %cst_15 {dimension_numbers = #tpu.dot_dimension_numbers<[1], [1], [0], [0], [0, 0, 1, 0], [], []>} : vector<8x8xf32>, vector<8x8xf32>, vector<8x8xf32> -> vector<8x8xf32>
    %35 = arith.addf %34, %12 : vector<8x8xf32>
    %cst_16 = arith.constant dense<0xFF800000> : vector<8xf32>
    %36 = vector.multi_reduction <maximumf>, %35, %cst_16 [1] : vector<8x8xf32> to vector<8xf32>
    %37 = vector.shape_cast %36 : vector<8xf32> to vector<8x1xf32>
    %38 = vector.broadcast %37 : vector<8x1xf32> to vector<8x8xf32>
    %39 = arith.subf %35, %38 : vector<8x8xf32>
    %40 = math.exp %39 : vector<8x8xf32>
    %cst_17 = arith.constant dense<0.000000e+00> : vector<8xf32>
    %41 = vector.multi_reduction <add>, %40, %cst_17 [1] : vector<8x8xf32> to vector<8xf32>
    %42 = vector.shape_cast %41 : vector<8xf32> to vector<8x1xf32>
    %43 = tpu.reciprocal %42 : vector<8x1xf32> -> vector<8x1xf32>
    %44 = vector.broadcast %43 : vector<8x1xf32> to vector<8x8xf32>
    %45 = arith.mulf %40, %44 : vector<8x8xf32>
    %cst_18 = arith.constant dense<0.000000e+00> : vector<8x8xf32>
    %46 = tpu.matmul %45, %33, %cst_18 {dimension_numbers = #tpu.dot_dimension_numbers<[1], [0], [0], [1], [0, 0, 1, 1], [], []>} : vector<8x8xf32>, vector<8x8xf32>, vector<8x8xf32> -> vector<8x8xf32>
    %c8 = arith.constant 8 : index
    %c0_19 = arith.constant 0 : index
    %47 = vector.load %arg3[%c8, %c0_19] : memref<68x32xf32, #tpu.memory_space<vmem>>, vector<8x32xf32>
    %cst_20 = arith.constant dense<0.000000e+00> : vector<8x32xf32>
    %48 = tpu.matmul %46, %47, %cst_20 {dimension_numbers = #tpu.dot_dimension_numbers<[1], [0], [0], [1], [0, 0, 1, 1], [], []>} : vector<8x8xf32>, vector<8x32xf32>, vector<8x32xf32> -> vector<8x32xf32>
    %49 = arith.addf %30, %48 : vector<8x32xf32>
    %50 = vector.extract_strided_slice %8 {offsets = [0, 16], sizes = [8, 8], strides = [1, 1]} : vector<16x32xf32> to vector<8x8xf32>
    %51 = vector.extract_strided_slice %9 {offsets = [0, 16], sizes = [8, 8], strides = [1, 1]} : vector<16x32xf32> to vector<8x8xf32>
    %52 = vector.extract_strided_slice %10 {offsets = [0, 16], sizes = [8, 8], strides = [1, 1]} : vector<16x32xf32> to vector<8x8xf32>
    %cst_21 = arith.constant dense<0.000000e+00> : vector<8x8xf32>
    %53 = tpu.matmul %50, %51, %cst_21 {dimension_numbers = #tpu.dot_dimension_numbers<[1], [1], [0], [0], [0, 0, 1, 0], [], []>} : vector<8x8xf32>, vector<8x8xf32>, vector<8x8xf32> -> vector<8x8xf32>
    %54 = arith.addf %53, %12 : vector<8x8xf32>
    %cst_22 = arith.constant dense<0xFF800000> : vector<8xf32>
    %55 = vector.multi_reduction <maximumf>, %54, %cst_22 [1] : vector<8x8xf32> to vector<8xf32>
    %56 = vector.shape_cast %55 : vector<8xf32> to vector<8x1xf32>
    %57 = vector.broadcast %56 : vector<8x1xf32> to vector<8x8xf32>
    %58 = arith.subf %54, %57 : vector<8x8xf32>
    %59 = math.exp %58 : vector<8x8xf32>
    %cst_23 = arith.constant dense<0.000000e+00> : vector<8xf32>
    %60 = vector.multi_reduction <add>, %59, %cst_23 [1] : vector<8x8xf32> to vector<8xf32>
    %61 = vector.shape_cast %60 : vector<8xf32> to vector<8x1xf32>
    %62 = tpu.reciprocal %61 : vector<8x1xf32> -> vector<8x1xf32>
    %63 = vector.broadcast %62 : vector<8x1xf32> to vector<8x8xf32>
    %64 = arith.mulf %59, %63 : vector<8x8xf32>
    %cst_24 = arith.constant dense<0.000000e+00> : vector<8x8xf32>
    %65 = tpu.matmul %64, %52, %cst_24 {dimension_numbers = #tpu.dot_dimension_numbers<[1], [0], [0], [1], [0, 0, 1, 1], [], []>} : vector<8x8xf32>, vector<8x8xf32>, vector<8x8xf32> -> vector<8x8xf32>
    %c16 = arith.constant 16 : index
    %c0_25 = arith.constant 0 : index
    %66 = vector.load %arg3[%c16, %c0_25] : memref<68x32xf32, #tpu.memory_space<vmem>>, vector<8x32xf32>
    %cst_26 = arith.constant dense<0.000000e+00> : vector<8x32xf32>
    %67 = tpu.matmul %65, %66, %cst_26 {dimension_numbers = #tpu.dot_dimension_numbers<[1], [0], [0], [1], [0, 0, 1, 1], [], []>} : vector<8x8xf32>, vector<8x32xf32>, vector<8x32xf32> -> vector<8x32xf32>
    %68 = arith.addf %49, %67 : vector<8x32xf32>
    %69 = vector.extract_strided_slice %8 {offsets = [0, 24], sizes = [8, 8], strides = [1, 1]} : vector<16x32xf32> to vector<8x8xf32>
    %70 = vector.extract_strided_slice %9 {offsets = [0, 24], sizes = [8, 8], strides = [1, 1]} : vector<16x32xf32> to vector<8x8xf32>
    %71 = vector.extract_strided_slice %10 {offsets = [0, 24], sizes = [8, 8], strides = [1, 1]} : vector<16x32xf32> to vector<8x8xf32>
    %cst_27 = arith.constant dense<0.000000e+00> : vector<8x8xf32>
    %72 = tpu.matmul %69, %70, %cst_27 {dimension_numbers = #tpu.dot_dimension_numbers<[1], [1], [0], [0], [0, 0, 1, 0], [], []>} : vector<8x8xf32>, vector<8x8xf32>, vector<8x8xf32> -> vector<8x8xf32>
    %73 = arith.addf %72, %12 : vector<8x8xf32>
    %cst_28 = arith.constant dense<0xFF800000> : vector<8xf32>
    %74 = vector.multi_reduction <maximumf>, %73, %cst_28 [1] : vector<8x8xf32> to vector<8xf32>
    %75 = vector.shape_cast %74 : vector<8xf32> to vector<8x1xf32>
    %76 = vector.broadcast %75 : vector<8x1xf32> to vector<8x8xf32>
    %77 = arith.subf %73, %76 : vector<8x8xf32>
    %78 = math.exp %77 : vector<8x8xf32>
    %cst_29 = arith.constant dense<0.000000e+00> : vector<8xf32>
    %79 = vector.multi_reduction <add>, %78, %cst_29 [1] : vector<8x8xf32> to vector<8xf32>
    %80 = vector.shape_cast %79 : vector<8xf32> to vector<8x1xf32>
    %81 = tpu.reciprocal %80 : vector<8x1xf32> -> vector<8x1xf32>
    %82 = vector.broadcast %81 : vector<8x1xf32> to vector<8x8xf32>
    %83 = arith.mulf %78, %82 : vector<8x8xf32>
    %cst_30 = arith.constant dense<0.000000e+00> : vector<8x8xf32>
    %84 = tpu.matmul %83, %71, %cst_30 {dimension_numbers = #tpu.dot_dimension_numbers<[1], [0], [0], [1], [0, 0, 1, 1], [], []>} : vector<8x8xf32>, vector<8x8xf32>, vector<8x8xf32> -> vector<8x8xf32>
    %c24 = arith.constant 24 : index
    %c0_31 = arith.constant 0 : index
    %85 = vector.load %arg3[%c24, %c0_31] : memref<68x32xf32, #tpu.memory_space<vmem>>, vector<8x32xf32>
    %cst_32 = arith.constant dense<0.000000e+00> : vector<8x32xf32>
    %86 = tpu.matmul %84, %85, %cst_32 {dimension_numbers = #tpu.dot_dimension_numbers<[1], [0], [0], [1], [0, 0, 1, 1], [], []>} : vector<8x8xf32>, vector<8x32xf32>, vector<8x32xf32> -> vector<8x32xf32>
    %87 = arith.addf %68, %86 : vector<8x32xf32>
    %c1 = arith.constant 1 : index
    %c0_33 = arith.constant 0 : index
    %c0_34 = arith.constant 0 : index
    %88 = vector.load %arg1[%c1, %c0_33, %c0_34] : memref<2x8x8xf32, #tpu.memory_space<vmem>>, vector<1x8x8xf32>
    %89 = vector.shape_cast %88 : vector<1x8x8xf32> to vector<8x8xf32>
    %90 = vector.extract_strided_slice %8 {offsets = [8, 0], sizes = [8, 8], strides = [1, 1]} : vector<16x32xf32> to vector<8x8xf32>
    %91 = vector.extract_strided_slice %9 {offsets = [8, 0], sizes = [8, 8], strides = [1, 1]} : vector<16x32xf32> to vector<8x8xf32>
    %92 = vector.extract_strided_slice %10 {offsets = [8, 0], sizes = [8, 8], strides = [1, 1]} : vector<16x32xf32> to vector<8x8xf32>
    %cst_35 = arith.constant dense<0.000000e+00> : vector<8x8xf32>
    %93 = tpu.matmul %90, %91, %cst_35 {dimension_numbers = #tpu.dot_dimension_numbers<[1], [1], [0], [0], [0, 0, 1, 0], [], []>} : vector<8x8xf32>, vector<8x8xf32>, vector<8x8xf32> -> vector<8x8xf32>
    %94 = arith.addf %93, %89 : vector<8x8xf32>
    %cst_36 = arith.constant dense<0xFF800000> : vector<8xf32>
    %95 = vector.multi_reduction <maximumf>, %94, %cst_36 [1] : vector<8x8xf32> to vector<8xf32>
    %96 = vector.shape_cast %95 : vector<8xf32> to vector<8x1xf32>
    %97 = vector.broadcast %96 : vector<8x1xf32> to vector<8x8xf32>
    %98 = arith.subf %94, %97 : vector<8x8xf32>
    %99 = math.exp %98 : vector<8x8xf32>
    %cst_37 = arith.constant dense<0.000000e+00> : vector<8xf32>
    %100 = vector.multi_reduction <add>, %99, %cst_37 [1] : vector<8x8xf32> to vector<8xf32>
    %101 = vector.shape_cast %100 : vector<8xf32> to vector<8x1xf32>
    %102 = tpu.reciprocal %101 : vector<8x1xf32> -> vector<8x1xf32>
    %103 = vector.broadcast %102 : vector<8x1xf32> to vector<8x8xf32>
    %104 = arith.mulf %99, %103 : vector<8x8xf32>
    %cst_38 = arith.constant dense<0.000000e+00> : vector<8x8xf32>
    %105 = tpu.matmul %104, %92, %cst_38 {dimension_numbers = #tpu.dot_dimension_numbers<[1], [0], [0], [1], [0, 0, 1, 1], [], []>} : vector<8x8xf32>, vector<8x8xf32>, vector<8x8xf32> -> vector<8x8xf32>
    %c0_39 = arith.constant 0 : index
    %c0_40 = arith.constant 0 : index
    %106 = vector.load %arg3[%c0_39, %c0_40] : memref<68x32xf32, #tpu.memory_space<vmem>>, vector<8x32xf32>
    %cst_41 = arith.constant dense<0.000000e+00> : vector<8x32xf32>
    %107 = tpu.matmul %105, %106, %cst_41 {dimension_numbers = #tpu.dot_dimension_numbers<[1], [0], [0], [1], [0, 0, 1, 1], [], []>} : vector<8x8xf32>, vector<8x32xf32>, vector<8x32xf32> -> vector<8x32xf32>
    %108 = vector.extract_strided_slice %8 {offsets = [8, 8], sizes = [8, 8], strides = [1, 1]} : vector<16x32xf32> to vector<8x8xf32>
    %109 = vector.extract_strided_slice %9 {offsets = [8, 8], sizes = [8, 8], strides = [1, 1]} : vector<16x32xf32> to vector<8x8xf32>
    %110 = vector.extract_strided_slice %10 {offsets = [8, 8], sizes = [8, 8], strides = [1, 1]} : vector<16x32xf32> to vector<8x8xf32>
    %cst_42 = arith.constant dense<0.000000e+00> : vector<8x8xf32>
    %111 = tpu.matmul %108, %109, %cst_42 {dimension_numbers = #tpu.dot_dimension_numbers<[1], [1], [0], [0], [0, 0, 1, 0], [], []>} : vector<8x8xf32>, vector<8x8xf32>, vector<8x8xf32> -> vector<8x8xf32>
    %112 = arith.addf %111, %89 : vector<8x8xf32>
    %cst_43 = arith.constant dense<0xFF800000> : vector<8xf32>
    %113 = vector.multi_reduction <maximumf>, %112, %cst_43 [1] : vector<8x8xf32> to vector<8xf32>
    %114 = vector.shape_cast %113 : vector<8xf32> to vector<8x1xf32>
    %115 = vector.broadcast %114 : vector<8x1xf32> to vector<8x8xf32>
    %116 = arith.subf %112, %115 : vector<8x8xf32>
    %117 = math.exp %116 : vector<8x8xf32>
    %cst_44 = arith.constant dense<0.000000e+00> : vector<8xf32>
    %118 = vector.multi_reduction <add>, %117, %cst_44 [1] : vector<8x8xf32> to vector<8xf32>
    %119 = vector.shape_cast %118 : vector<8xf32> to vector<8x1xf32>
    %120 = tpu.reciprocal %119 : vector<8x1xf32> -> vector<8x1xf32>
    %121 = vector.broadcast %120 : vector<8x1xf32> to vector<8x8xf32>
    %122 = arith.mulf %117, %121 : vector<8x8xf32>
    %cst_45 = arith.constant dense<0.000000e+00> : vector<8x8xf32>
    %123 = tpu.matmul %122, %110, %cst_45 {dimension_numbers = #tpu.dot_dimension_numbers<[1], [0], [0], [1], [0, 0, 1, 1], [], []>} : vector<8x8xf32>, vector<8x8xf32>, vector<8x8xf32> -> vector<8x8xf32>
    %c8_46 = arith.constant 8 : index
    %c0_47 = arith.constant 0 : index
    %124 = vector.load %arg3[%c8_46, %c0_47] : memref<68x32xf32, #tpu.memory_space<vmem>>, vector<8x32xf32>
    %cst_48 = arith.constant dense<0.000000e+00> : vector<8x32xf32>
    %125 = tpu.matmul %123, %124, %cst_48 {dimension_numbers = #tpu.dot_dimension_numbers<[1], [0], [0], [1], [0, 0, 1, 1], [], []>} : vector<8x8xf32>, vector<8x32xf32>, vector<8x32xf32> -> vector<8x32xf32>
    %126 = arith.addf %107, %125 : vector<8x32xf32>
    %127 = vector.extract_strided_slice %8 {offsets = [8, 16], sizes = [8, 8], strides = [1, 1]} : vector<16x32xf32> to vector<8x8xf32>
    %128 = vector.extract_strided_slice %9 {offsets = [8, 16], sizes = [8, 8], strides = [1, 1]} : vector<16x32xf32> to vector<8x8xf32>
    %129 = vector.extract_strided_slice %10 {offsets = [8, 16], sizes = [8, 8], strides = [1, 1]} : vector<16x32xf32> to vector<8x8xf32>
    %cst_49 = arith.constant dense<0.000000e+00> : vector<8x8xf32>
    %130 = tpu.matmul %127, %128, %cst_49 {dimension_numbers = #tpu.dot_dimension_numbers<[1], [1], [0], [0], [0, 0, 1, 0], [], []>} : vector<8x8xf32>, vector<8x8xf32>, vector<8x8xf32> -> vector<8x8xf32>
    %131 = arith.addf %130, %89 : vector<8x8xf32>
    %cst_50 = arith.constant dense<0xFF800000> : vector<8xf32>
    %132 = vector.multi_reduction <maximumf>, %131, %cst_50 [1] : vector<8x8xf32> to vector<8xf32>
    %133 = vector.shape_cast %132 : vector<8xf32> to vector<8x1xf32>
    %134 = vector.broadcast %133 : vector<8x1xf32> to vector<8x8xf32>
    %135 = arith.subf %131, %134 : vector<8x8xf32>
    %136 = math.exp %135 : vector<8x8xf32>
    %cst_51 = arith.constant dense<0.000000e+00> : vector<8xf32>
    %137 = vector.multi_reduction <add>, %136, %cst_51 [1] : vector<8x8xf32> to vector<8xf32>
    %138 = vector.shape_cast %137 : vector<8xf32> to vector<8x1xf32>
    %139 = tpu.reciprocal %138 : vector<8x1xf32> -> vector<8x1xf32>
    %140 = vector.broadcast %139 : vector<8x1xf32> to vector<8x8xf32>
    %141 = arith.mulf %136, %140 : vector<8x8xf32>
    %cst_52 = arith.constant dense<0.000000e+00> : vector<8x8xf32>
    %142 = tpu.matmul %141, %129, %cst_52 {dimension_numbers = #tpu.dot_dimension_numbers<[1], [0], [0], [1], [0, 0, 1, 1], [], []>} : vector<8x8xf32>, vector<8x8xf32>, vector<8x8xf32> -> vector<8x8xf32>
    %c16_53 = arith.constant 16 : index
    %c0_54 = arith.constant 0 : index
    %143 = vector.load %arg3[%c16_53, %c0_54] : memref<68x32xf32, #tpu.memory_space<vmem>>, vector<8x32xf32>
    %cst_55 = arith.constant dense<0.000000e+00> : vector<8x32xf32>
    %144 = tpu.matmul %142, %143, %cst_55 {dimension_numbers = #tpu.dot_dimension_numbers<[1], [0], [0], [1], [0, 0, 1, 1], [], []>} : vector<8x8xf32>, vector<8x32xf32>, vector<8x32xf32> -> vector<8x32xf32>
    %145 = arith.addf %126, %144 : vector<8x32xf32>
    %146 = vector.extract_strided_slice %8 {offsets = [8, 24], sizes = [8, 8], strides = [1, 1]} : vector<16x32xf32> to vector<8x8xf32>
    %147 = vector.extract_strided_slice %9 {offsets = [8, 24], sizes = [8, 8], strides = [1, 1]} : vector<16x32xf32> to vector<8x8xf32>
    %148 = vector.extract_strided_slice %10 {offsets = [8, 24], sizes = [8, 8], strides = [1, 1]} : vector<16x32xf32> to vector<8x8xf32>
    %cst_56 = arith.constant dense<0.000000e+00> : vector<8x8xf32>
    %149 = tpu.matmul %146, %147, %cst_56 {dimension_numbers = #tpu.dot_dimension_numbers<[1], [1], [0], [0], [0, 0, 1, 0], [], []>} : vector<8x8xf32>, vector<8x8xf32>, vector<8x8xf32> -> vector<8x8xf32>
    %150 = arith.addf %149, %89 : vector<8x8xf32>
    %cst_57 = arith.constant dense<0xFF800000> : vector<8xf32>
    %151 = vector.multi_reduction <maximumf>, %150, %cst_57 [1] : vector<8x8xf32> to vector<8xf32>
    %152 = vector.shape_cast %151 : vector<8xf32> to vector<8x1xf32>
    %153 = vector.broadcast %152 : vector<8x1xf32> to vector<8x8xf32>
    %154 = arith.subf %150, %153 : vector<8x8xf32>
    %155 = math.exp %154 : vector<8x8xf32>
    %cst_58 = arith.constant dense<0.000000e+00> : vector<8xf32>
    %156 = vector.multi_reduction <add>, %155, %cst_58 [1] : vector<8x8xf32> to vector<8xf32>
    %157 = vector.shape_cast %156 : vector<8xf32> to vector<8x1xf32>
    %158 = tpu.reciprocal %157 : vector<8x1xf32> -> vector<8x1xf32>
    %159 = vector.broadcast %158 : vector<8x1xf32> to vector<8x8xf32>
    %160 = arith.mulf %155, %159 : vector<8x8xf32>
    %cst_59 = arith.constant dense<0.000000e+00> : vector<8x8xf32>
    %161 = tpu.matmul %160, %148, %cst_59 {dimension_numbers = #tpu.dot_dimension_numbers<[1], [0], [0], [1], [0, 0, 1, 1], [], []>} : vector<8x8xf32>, vector<8x8xf32>, vector<8x8xf32> -> vector<8x8xf32>
    %c24_60 = arith.constant 24 : index
    %c0_61 = arith.constant 0 : index
    %162 = vector.load %arg3[%c24_60, %c0_61] : memref<68x32xf32, #tpu.memory_space<vmem>>, vector<8x32xf32>
    %cst_62 = arith.constant dense<0.000000e+00> : vector<8x32xf32>
    %163 = tpu.matmul %161, %162, %cst_62 {dimension_numbers = #tpu.dot_dimension_numbers<[1], [0], [0], [1], [0, 0, 1, 1], [], []>} : vector<8x8xf32>, vector<8x32xf32>, vector<8x32xf32> -> vector<8x32xf32>
    %164 = arith.addf %145, %163 : vector<8x32xf32>
    %165 = tpu.concatenate %87, %164 in 0 : vector<8x32xf32>, vector<8x32xf32> -> vector<16x32xf32>
    %c32_63 = arith.constant 32 : index
    %c0_64 = arith.constant 0 : index
    %166 = vector.load %arg3[%c32_63, %c0_64] : memref<68x32xf32, #tpu.memory_space<vmem>>, vector<32x32xf32>
    %c64 = arith.constant 64 : index
    %c0_65 = arith.constant 0 : index
    %167 = vector.load %arg3[%c64, %c0_65] : memref<68x32xf32, #tpu.memory_space<vmem>>, vector<4x32xf32>
    %168 = vector.extract_strided_slice %167 {offsets = [0, 0], sizes = [1, 32], strides = [1, 1]} : vector<4x32xf32> to vector<1x32xf32>
    %169 = vector.extract_strided_slice %167 {offsets = [1, 0], sizes = [1, 32], strides = [1, 1]} : vector<4x32xf32> to vector<1x32xf32>
    %170 = vector.extract_strided_slice %167 {offsets = [2, 0], sizes = [1, 32], strides = [1, 1]} : vector<4x32xf32> to vector<1x32xf32>
    %171 = vector.extract_strided_slice %167 {offsets = [3, 0], sizes = [1, 32], strides = [1, 1]} : vector<4x32xf32> to vector<1x32xf32>
    %172 = vector.broadcast %168 : vector<1x32xf32> to vector<16x32xf32>
    %173 = arith.addf %165, %172 : vector<16x32xf32>
    %cst_66 = arith.constant dense<0.000000e+00> : vector<16x32xf32>
    %174 = tpu.matmul %173, %166, %cst_66 {dimension_numbers = #tpu.dot_dimension_numbers<[1], [0], [0], [1], [0, 0, 1, 1], [], []>} : vector<16x32xf32>, vector<32x32xf32>, vector<16x32xf32> -> vector<16x32xf32>
    %175 = arith.addf %0, %174 : vector<16x32xf32>
    %176 = vector.broadcast %169 : vector<1x32xf32> to vector<16x32xf32>
    %177 = arith.addf %175, %176 : vector<16x32xf32>
    %cst_67 = arith.constant dense<0.000000e+00> : vector<16xf32>
    %178 = vector.multi_reduction <add>, %177, %cst_67 [1] : vector<16x32xf32> to vector<16xf32>
    %179 = vector.shape_cast %178 : vector<16xf32> to vector<16x1xf32>
    %cst_68 = arith.constant 3.200000e+01 : f32
    %180 = vector.broadcast %cst_68 : f32 to vector<16x1xf32>
    %181 = arith.divf %179, %180 : vector<16x1xf32>
    %182 = vector.broadcast %181 : vector<16x1xf32> to vector<16x32xf32>
    %183 = arith.subf %177, %182 : vector<16x32xf32>
    %184 = arith.mulf %183, %183 : vector<16x32xf32>
    %cst_69 = arith.constant dense<0.000000e+00> : vector<16xf32>
    %185 = vector.multi_reduction <add>, %184, %cst_69 [1] : vector<16x32xf32> to vector<16xf32>
    %186 = vector.shape_cast %185 : vector<16xf32> to vector<16x1xf32>
    %cst_70 = arith.constant 3.200000e+01 : f32
    %187 = vector.broadcast %cst_70 : f32 to vector<16x1xf32>
    %188 = arith.divf %186, %187 : vector<16x1xf32>
    %189 = vector.broadcast %181 : vector<16x1xf32> to vector<16x32xf32>
    %190 = arith.subf %177, %189 : vector<16x32xf32>
    %cst_71 = arith.constant 9.99999974E-6 : f32
    %191 = vector.broadcast %cst_71 : f32 to vector<16x1xf32>
    %192 = arith.addf %188, %191 : vector<16x1xf32>
    %193 = math.rsqrt %192 : vector<16x1xf32>
    %194 = vector.broadcast %193 : vector<16x1xf32> to vector<16x32xf32>
    %195 = arith.mulf %190, %194 : vector<16x32xf32>
    %196 = vector.broadcast %170 : vector<1x32xf32> to vector<16x32xf32>
    %197 = arith.mulf %195, %196 : vector<16x32xf32>
    %198 = vector.broadcast %171 : vector<1x32xf32> to vector<16x32xf32>
    %199 = arith.addf %197, %198 : vector<16x32xf32>
    %c0_72 = arith.constant 0 : index
    %c0_73 = arith.constant 0 : index
    %200 = vector.load %arg4[%c0_72, %c0_73] : memref<16x32xf32, #tpu.memory_space<vmem>>, vector<16x32xf32>
    tpu.vector_store %arg4[%c0_72, %c0_73], %199 {strides = array<i32>} : memref<16x32xf32, #tpu.memory_space<vmem>>, vector<16x32xf32>,
    return
  }
}

</mosaic_0001>

<llo_original>
// kernel: tpu_custom_call.1
$region0: #{tpu_custom_call.1}
  #allocation0 [shape = 'u32[]', space=smem, size = 0x4, offset = 0x4, fixed_abs, tag = 'smem constant byte address 0x4 - core index']
  #allocation1 [shape = 'u32[144,128]{1,0:T(1,128)}', space=vmem, size = 0x12000, scoped, tag = 'internal scratch']
  %s0 = inlined_call_operand.vmem [shape: f32[16,32], index: 0, kind: input, shape index: {}]
  %s1 = inlined_call_operand.vmem [shape: f32[2,8,8], index: 1, kind: input, shape index: {}]
  %s2 = inlined_call_operand.vmem [shape: f32[33,96], index: 2, kind: input, shape index: {}]
  %s3 = inlined_call_operand.vmem [shape: f32[68,32], index: 3, kind: input, shape index: {}]
  %s4 = inlined_call_operand.hbm [shape: f32[16,32], index: 4, kind: output, shape index: {}]
  %s5 = sld [smem:[#allocation0]]
  $region26: #{tpu_custom_call.1} parent=0
    _
  %s7 = ssub.s32 1, %s5
  %s8 = scalar_select 0, %s7, %s5
  $region1: #{tpu_custom_call.1} parent=0
    #allocation2 [shape = 'u8[8192]{0}', space=vmem, size = 0x2000, scoped, tag = 'output window, operand 0, single buffered']
    #allocation3 [shape = 's32[1]{0}', space=sflag, size = 0x4, scoped, tag = 'scoped memory for tpu_custom_call.1']
    %9 = vsyncpa [#allocation3], 0
    // Predicated region
    $region2: #{tpu_custom_call.1} parent=1 // pred_check
      _
    $region3: #{tpu_custom_call.1} parent=1 // pred_check_branch
      %11 = sbr.rel (0) target = $region5
    $region4: #{tpu_custom_call.1} parent=1 // pred_region
      _
    $region5: #{tpu_custom_call.1} parent=1 // pred_fallthru
      _
    // Predicated region
    $region6: #{tpu_custom_call.1} parent=1 // pred_check
      _
    $region7: #{tpu_custom_call.1} parent=1 // pred_check_branch
      %13 = sbr.rel (0) target = $region9
    $region8: #{tpu_custom_call.1} parent=1 // pred_region
      _
    $region9: #{tpu_custom_call.1} parent=1 // pred_fallthru
      _
    // Predicated region
    $region10: #{tpu_custom_call.1} parent=1 // pred_check
      _
    $region11: #{tpu_custom_call.1} parent=1 // pred_check_branch
      %15 = sbr.rel (0) target = $region13
    $region12: #{tpu_custom_call.1} parent=1 // pred_region
      _
    $region13: #{tpu_custom_call.1} parent=1 // pred_fallthru
      _
    // Predicated region
    $region14: #{tpu_custom_call.1} parent=1 // pred_check
      _
    $region15: #{tpu_custom_call.1} parent=1 // pred_check_branch
      %17 = sbr.rel (0) target = $region17
    $region16: #{tpu_custom_call.1} parent=1 // pred_region
      _
    $region17: #{tpu_custom_call.1} parent=1 // pred_fallthru
      _
    %v18 = vld [vmem:[%s0] sm:$0xff]
    %v19 = vld [vmem:[%s0 + $0x8] sm:$0xff]
    %v20 = vld [vmem:[%s2] sm:$0xff]
    %v21 = vld [vmem:[%s2 + $0x8] sm:$0xff]
    %v22 = vld [vmem:[%s2 + $0x10] sm:$0xff]
    %v23 = vld [vmem:[%s2 + $0x18] sm:$0xff]
    %v24 = vld [vmem:[%s2 + $0x20] sm:$0x1]
    %v25 = vlaneseq
    %v26 = vshrl.u32 %v25, 7
    %v27 = vsub.s32 0, %v26
    %v28 = vrot.slane %v24, %v27
    %vm29 = vcmask 261120
    %v31 = vsel %vm29, %v18, 0
    %v34 = vsel %vm29, %v19, 0
    %36 = vmatprep.subr.mxu0 0.0
    %37 = vmatpush1.msra.mxu0 0.0
    %38 = vmatprep.subr.mxu0 0.0
    %39 = vmatpush1.msra.mxu0 0.0
    %40 = vmatprep.subr.mxu0 0.0
    %41 = vmatpush1.msra.mxu0 0.0
    %42 = vmatprep.subr.mxu0 0.0
    %43 = vmatpush1.msra.mxu0 0.0
    %44 = vmatprep.subr.mxu0 0.0
    %45 = vmatpush1.msra.mxu0 0.0
    %46 = vmatprep.subr.mxu0 0.0
    %47 = vmatpush1.msra.mxu0 0.0
    %48 = vmatprep.subr.mxu0 0.0
    %49 = vmatpush1.msra.mxu0 0.0
    %50 = vmatprep.subr.mxu0 0.0
    %51 = vmatpush1.msra.mxu0 0.0
    %52 = vmatprep.subr.mxu0 0.0
    %53 = vmatpush1.msra.mxu0 0.0
    %54 = vmatprep.subr.mxu0 0.0
    %55 = vmatpush1.msra.mxu0 0.0
    %56 = vmatprep.subr.mxu0 0.0
    %57 = vmatpush1.msra.mxu0 0.0
    %58 = vmatprep.subr.mxu0 0.0
    %59 = vmatpush1.msra.mxu0 0.0
    %60 = vmatprep.subr.mxu0 0.0
    %61 = vmatpush1.msra.mxu0 %v23
    %62 = vmatprep.subr.mxu0 0.0
    %63 = vmatpush1.msra.mxu0 %v22
    %64 = vmatprep.subr.mxu0 0.0
    %65 = vmatpush1.msra.mxu0 %v21
    %66 = vmatprep.subr.mxu0 0.0
    %67 = vmatpush1.msra.mxu0 %v20
    %68 = vmatprep.subr.mxu0 0.0
    %69 = vmatpush2.msra.mxu0 0.0
    %70 = vmatprep.subr.mxu0 0.0
    %71 = vmatpush2.msra.mxu0 0.0
    %72 = vmatprep.subr.mxu0 0.0
    %73 = vmatpush2.msra.mxu0 0.0
    %74 = vmatprep.subr.mxu0 0.0
    %75 = vmatpush2.msra.mxu0 0.0
    %76 = vmatprep.subr.mxu0 0.0
    %77 = vmatpush2.msra.mxu0 0.0
    %78 = vmatprep.subr.mxu0 0.0
    %79 = vmatpush2.msra.mxu0 0.0
    %80 = vmatprep.subr.mxu0 0.0
    %81 = vmatpush2.msra.mxu0 0.0
    %82 = vmatprep.subr.mxu0 0.0
    %83 = vmatpush2.msra.mxu0 0.0
    %84 = vmatprep.subr.mxu0 0.0
    %85 = vmatpush2.msra.mxu0 0.0
    %86 = vmatprep.subr.mxu0 0.0
    %87 = vmatpush2.msra.mxu0 0.0
    %88 = vmatprep.subr.mxu0 0.0
    %89 = vmatpush2.msra.mxu0 0.0
    %90 = vmatprep.subr.mxu0 0.0
    %91 = vmatpush2.msra.mxu0 0.0
    %92 = vmatprep.subr.mxu0 0.0
    %93 = vmatpush2.msra.mxu0 0.0
    %94 = vmatprep.subr.mxu0 0.0
    %95 = vmatpush2.msra.mxu0 0.0
    %96 = vmatprep.subr.mxu0 0.0
    %97 = vmatpush2.msra.mxu0 0.0
    %98 = vmatprep.subr.mxu0 0.0
    %99 = vmatpush2.msra.mxu0 0.0
    %100 = vmatprep.mubr.f32.mxu0 0.0
    %101 = vmatmul.mubr.f32.gmra.mxu0 %v31
    %v102 = vpop.f32.mrf.mxu0
    %v103 = vadd.f32 %v28, %v102
    %v104 = vpop.f32.mrf.mxu0
    %105 = vmatprep.mubr.f32.mxu0 0.0
    %106 = vmatmul.mubr.f32.gmra.mxu0 %v34
    %v107 = vpop.f32.mrf.mxu0
    %v108 = vadd.f32 %v28, %v107
    %v109 = vpop.f32.mrf.mxu0
    %110 = vdwg.mxu0
    %v111 = vmul.f32 %v103, 0.35355338
    %v112 = vmul.f32 %v108, 0.35355338
    %v113 = vld [vmem:[%s1] sm:$0xff]
    %115 = vrot.lane.b32.xlu0 %v103, 96
    %v116 = vpop.permute.xlu0 %115
    %vm117 = vcmask 64512
    %v119 = vsel %vm117, %v111, 0
    %v121 = vsel %vm117, %v116, 0
    %123 = vmatprep.subr.mxu0 0.0
    %124 = vmatpush1.xpose.msra.mxu0 0.0
    %125 = vmatprep.subr.mxu0 0.0
    %126 = vmatpush1.xpose.msra.mxu0 0.0
    %127 = vmatprep.subr.mxu0 0.0
    %128 = vmatpush1.xpose.msra.mxu0 0.0
    %129 = vmatprep.subr.mxu0 0.0
    %130 = vmatpush1.xpose.msra.mxu0 0.0
    %131 = vmatprep.subr.mxu0 0.0
    %132 = vmatpush1.xpose.msra.mxu0 0.0
    %133 = vmatprep.subr.mxu0 0.0
    %134 = vmatpush1.xpose.msra.mxu0 0.0
    %135 = vmatprep.subr.mxu0 0.0
    %136 = vmatpush1.xpose.msra.mxu0 0.0
    %137 = vmatprep.subr.mxu0 0.0
    %138 = vmatpush1.xpose.msra.mxu0 0.0
    %139 = vmatprep.subr.mxu0 0.0
    %140 = vmatpush1.xpose.msra.mxu0 0.0
    %141 = vmatprep.subr.mxu0 0.0
    %142 = vmatpush1.xpose.msra.mxu0 0.0
    %143 = vmatprep.subr.mxu0 0.0
    %144 = vmatpush1.xpose.msra.mxu0 0.0
    %145 = vmatprep.subr.mxu0 0.0
    %146 = vmatpush1.xpose.msra.mxu0 0.0
    %147 = vmatprep.subr.mxu0 0.0
    %148 = vmatpush1.xpose.msra.mxu0 0.0
    %149 = vmatprep.subr.mxu0 0.0
    %150 = vmatpush1.xpose.msra.mxu0 0.0
    %151 = vmatprep.subr.mxu0 0.0
    %152 = vmatpush1.xpose.msra.mxu0 0.0
    %153 = vmatprep.subr.mxu0 0.0
    %154 = vmatpush1.xpose.msra.mxu0 %v121
    %155 = vmatprep.subr.mxu0 0.0
    %156 = vmatpush2.xpose.msra.mxu0 0.0
    %157 = vmatprep.subr.mxu0 0.0
    %158 = vmatpush2.xpose.msra.mxu0 0.0
    %159 = vmatprep.subr.mxu0 0.0
    %160 = vmatpush2.xpose.msra.mxu0 0.0
    %161 = vmatprep.subr.mxu0 0.0
    %162 = vmatpush2.xpose.msra.mxu0 0.0
    %163 = vmatprep.subr.mxu0 0.0
    %164 = vmatpush2.xpose.msra.mxu0 0.0
    %165 = vmatprep.subr.mxu0 0.0
    %166 = vmatpush2.xpose.msra.mxu0 0.0
    %167 = vmatprep.subr.mxu0 0.0
    %168 = vmatpush2.xpose.msra.mxu0 0.0
    %169 = vmatprep.subr.mxu0 0.0
    %170 = vmatpush2.xpose.msra.mxu0 0.0
    %171 = vmatprep.subr.mxu0 0.0
    %172 = vmatpush2.xpose.msra.mxu0 0.0
    %173 = vmatprep.subr.mxu0 0.0
    %174 = vmatpush2.xpose.msra.mxu0 0.0
    %175 = vmatprep.subr.mxu0 0.0
    %176 = vmatpush2.xpose.msra.mxu0 0.0
    %177 = vmatprep.subr.mxu0 0.0
    %178 = vmatpush2.xpose.msra.mxu0 0.0
    %179 = vmatprep.subr.mxu0 0.0
    %180 = vmatpush2.xpose.msra.mxu0 0.0
    %181 = vmatprep.subr.mxu0 0.0
    %182 = vmatpush2.xpose.msra.mxu0 0.0
    %183 = vmatprep.subr.mxu0 0.0
    %184 = vmatpush2.xpose.msra.mxu0 0.0
    %185 = vmatprep.subr.mxu0 0.0
    %186 = vmatpush2.xpose.msra.mxu0 0.0
    %187 = vmatprep.mubr.f32.mxu0 0.0
    %188 = vmatmul.mubr.f32.gmra.mxu0 %v119
    %v189 = vpop.f32.mrf.mxu0
    %v190 = vadd.f32 %v113, %v189
    %v191 = vpop.f32.mrf.mxu0
    %192 = vdwg.mxu0
    %v193 = vsel %vm117, %v190, -inf
    %194 = vmax.xlane.f32.xlu0 %v193
    %v195 = vpop.xlane.xlu0 %194
    %v196 = vsub.f32 %v190, %v195
    %v197 = vmul.f32 %v196, 1.442695
    %v198 = vpow.pop %v197
    %v199 = vsel %vm117, %v198, 0.0
    %200 = vadd.xlane.f32.xlu0 %v199
    %v201 = vpop.xlane.xlu0 %200
    %v202 = vrcp.pop %v201
    %v203 = vmul.f32 %v198, %v202
    %204 = vrot.lane.b32.xlu0 %v103, 64
    %v205 = vpop.permute.xlu0 %204
    %v208 = vsel %vm117, %v203, 0
    %210 = vmatprep.subr.mxu0 0.0
    %211 = vmatpush1.msra.mxu0 0.0
    %212 = vmatprep.subr.mxu0 0.0
    %213 = vmatpush1.msra.mxu0 0.0
    %214 = vmatprep.subr.mxu0 0.0
    %215 = vmatpush1.msra.mxu0 0.0
    %216 = vmatprep.subr.mxu0 0.0
    %217 = vmatpush1.msra.mxu0 0.0
    %218 = vmatprep.subr.mxu0 0.0
    %219 = vmatpush1.msra.mxu0 0.0
    %220 = vmatprep.subr.mxu0 0.0
    %221 = vmatpush1.msra.mxu0 0.0
    %222 = vmatprep.subr.mxu0 0.0
    %223 = vmatpush1.msra.mxu0 0.0
    %224 = vmatprep.subr.mxu0 0.0
    %225 = vmatpush1.msra.mxu0 0.0
    %226 = vmatprep.subr.mxu0 0.0
    %227 = vmatpush1.msra.mxu0 0.0
    %228 = vmatprep.subr.mxu0 0.0
    %229 = vmatpush1.msra.mxu0 0.0
    %230 = vmatprep.subr.mxu0 0.0
    %231 = vmatpush1.msra.mxu0 0.0
    %232 = vmatprep.subr.mxu0 0.0
    %233 = vmatpush1.msra.mxu0 0.0
    %234 = vmatprep.subr.mxu0 0.0
    %235 = vmatpush1.msra.mxu0 0.0
    %236 = vmatprep.subr.mxu0 0.0
    %237 = vmatpush1.msra.mxu0 0.0
    %238 = vmatprep.subr.mxu0 0.0
    %239 = vmatpush1.msra.mxu0 0.0
    %240 = vmatprep.subr.mxu0 0.0
    %241 = vmatpush1.msra.mxu0 %v205
    %242 = vmatprep.subr.mxu0 0.0
    %243 = vmatpush2.msra.mxu0 0.0
    %244 = vmatprep.subr.mxu0 0.0
    %245 = vmatpush2.msra.mxu0 0.0
    %246 = vmatprep.subr.mxu0 0.0
    %247 = vmatpush2.msra.mxu0 0.0
    %248 = vmatprep.subr.mxu0 0.0
    %249 = vmatpush2.msra.mxu0 0.0
    %250 = vmatprep.subr.mxu0 0.0
    %251 = vmatpush2.msra.mxu0 0.0
    %252 = vmatprep.subr.mxu0 0.0
    %253 = vmatpush2.msra.mxu0 0.0
    %254 = vmatprep.subr.mxu0 0.0
    %255 = vmatpush2.msra.mxu0 0.0
    %256 = vmatprep.subr.mxu0 0.0
    %257 = vmatpush2.msra.mxu0 0.0
    %258 = vmatprep.subr.mxu0 0.0
    %259 = vmatpush2.msra.mxu0 0.0
    %260 = vmatprep.subr.mxu0 0.0
    %261 = vmatpush2.msra.mxu0 0.0
    %262 = vmatprep.subr.mxu0 0.0
    %263 = vmatpush2.msra.mxu0 0.0
    %264 = vmatprep.subr.mxu0 0.0
    %265 = vmatpush2.msra.mxu0 0.0
    %266 = vmatprep.subr.mxu0 0.0
    %267 = vmatpush2.msra.mxu0 0.0
    %268 = vmatprep.subr.mxu0 0.0
    %269 = vmatpush2.msra.mxu0 0.0
    %270 = vmatprep.subr.mxu0 0.0
    %271 = vmatpush2.msra.mxu0 0.0
    %272 = vmatprep.subr.mxu0 0.0
    %273 = vmatpush2.msra.mxu0 0.0
    %274 = vmatprep.mubr.f32.mxu0 0.0
    %275 = vmatmul.mubr.f32.gmra.mxu0 %v208
    %v276 = vpop.f32.mrf.mxu0
    %v277 = vadd.f32 0.0, %v276
    %v278 = vpop.f32.mrf.mxu0
    %279 = vdwg.mxu0
    %v280 = vld [vmem:[%s3] sm:$0xff]
    %281 = vrot.lane.b32.xlu0 %v111, 120
    %v282 = vpop.permute.xlu0 %281
    %283 = vrot.lane.b32.xlu0 %v103, 88
    %v284 = vpop.permute.xlu0 %283
    %v285 = vsel %vm117, %v282, 0
    %v287 = vsel %vm117, %v284, 0
    %289 = vmatprep.subr.mxu0 0.0
    %290 = vmatpush1.xpose.msra.mxu0 0.0
    %291 = vmatprep.subr.mxu0 0.0
    %292 = vmatpush1.xpose.msra.mxu0 0.0
    %293 = vmatprep.subr.mxu0 0.0
    %294 = vmatpush1.xpose.msra.mxu0 0.0
    %295 = vmatprep.subr.mxu0 0.0
    %296 = vmatpush1.xpose.msra.mxu0 0.0
    %297 = vmatprep.subr.mxu0 0.0
    %298 = vmatpush1.xpose.msra.mxu0 0.0
    %299 = vmatprep.subr.mxu0 0.0
    %300 = vmatpush1.xpose.msra.mxu0 0.0
    %301 = vmatprep.subr.mxu0 0.0
    %302 = vmatpush1.xpose.msra.mxu0 0.0
    %303 = vmatprep.subr.mxu0 0.0
    %304 = vmatpush1.xpose.msra.mxu0 0.0
    %305 = vmatprep.subr.mxu0 0.0
    %306 = vmatpush1.xpose.msra.mxu0 0.0
    %307 = vmatprep.subr.mxu0 0.0
    %308 = vmatpush1.xpose.msra.mxu0 0.0
    %309 = vmatprep.subr.mxu0 0.0
    %310 = vmatpush1.xpose.msra.mxu0 0.0
    %311 = vmatprep.subr.mxu0 0.0
    %312 = vmatpush1.xpose.msra.mxu0 0.0
    %313 = vmatprep.subr.mxu0 0.0
    %314 = vmatpush1.xpose.msra.mxu0 0.0
    %315 = vmatprep.subr.mxu0 0.0
    %316 = vmatpush1.xpose.msra.mxu0 0.0
    %317 = vmatprep.subr.mxu0 0.0
    %318 = vmatpush1.xpose.msra.mxu0 0.0
    %319 = vmatprep.subr.mxu0 0.0
    %320 = vmatpush1.xpose.msra.mxu0 %v287
    %321 = vmatprep.subr.mxu0 0.0
    %322 = vmatpush2.xpose.msra.mxu0 0.0
    %323 = vmatprep.subr.mxu0 0.0
    %324 = vmatpush2.xpose.msra.mxu0 0.0
    %325 = vmatprep.subr.mxu0 0.0
    %326 = vmatpush2.xpose.msra.mxu0 0.0
    %327 = vmatprep.subr.mxu0 0.0
    %328 = vmatpush2.xpose.msra.mxu0 0.0
    %329 = vmatprep.subr.mxu0 0.0
    %330 = vmatpush2.xpose.msra.mxu0 0.0
    %331 = vmatprep.subr.mxu0 0.0
    %332 = vmatpush2.xpose.msra.mxu0 0.0
    %333 = vmatprep.subr.mxu0 0.0
    %334 = vmatpush2.xpose.msra.mxu0 0.0
    %335 = vmatprep.subr.mxu0 0.0
    %336 = vmatpush2.xpose.msra.mxu0 0.0
    %337 = vmatprep.subr.mxu0 0.0
    %338 = vmatpush2.xpose.msra.mxu0 0.0
    %339 = vmatprep.subr.mxu0 0.0
    %340 = vmatpush2.xpose.msra.mxu0 0.0
    %341 = vmatprep.subr.mxu0 0.0
    %342 = vmatpush2.xpose.msra.mxu0 0.0
    %343 = vmatprep.subr.mxu0 0.0
    %344 = vmatpush2.xpose.msra.mxu0 0.0
    %345 = vmatprep.subr.mxu0 0.0
    %346 = vmatpush2.xpose.msra.mxu0 0.0
    %347 = vmatprep.subr.mxu0 0.0
    %348 = vmatpush2.xpose.msra.mxu0 0.0
    %349 = vmatprep.subr.mxu0 0.0
    %350 = vmatpush2.xpose.msra.mxu0 0.0
    %351 = vmatprep.subr.mxu0 0.0
    %352 = vmatpush2.xpose.msra.mxu0 0.0
    %353 = vmatprep.mubr.f32.mxu0 0.0
    %354 = vmatmul.mubr.f32.gmra.mxu0 %v285
    %v355 = vpop.f32.mrf.mxu0
    %v356 = vadd.f32 %v113, %v355
    %v357 = vpop.f32.mrf.mxu0
    %358 = vdwg.mxu0
    %v359 = vsel %vm117, %v356, -inf
    %360 = vmax.xlane.f32.xlu0 %v359
    %v361 = vpop.xlane.xlu0 %360
    %v362 = vsub.f32 %v356, %v361
    %v363 = vmul.f32 %v362, 1.442695
    %v364 = vpow.pop %v363
    %v365 = vsel %vm117, %v364, 0.0
    %366 = vadd.xlane.f32.xlu0 %v365
    %v367 = vpop.xlane.xlu0 %366
    %v368 = vrcp.pop %v367
    %v369 = vmul.f32 %v364, %v368
    %370 = vrot.lane.b32.xlu0 %v103, 56
    %v371 = vpop.permute.xlu0 %370
    %v374 = vsel %vm117, %v369, 0
    %376 = vmatprep.subr.mxu0 0.0
    %377 = vmatpush1.msra.mxu0 0.0
    %378 = vmatprep.subr.mxu0 0.0
    %379 = vmatpush1.msra.mxu0 0.0
    %380 = vmatprep.subr.mxu0 0.0
    %381 = vmatpush1.msra.mxu0 0.0
    %382 = vmatprep.subr.mxu0 0.0
    %383 = vmatpush1.msra.mxu0 0.0
    %384 = vmatprep.subr.mxu0 0.0
    %385 = vmatpush1.msra.mxu0 0.0
    %386 = vmatprep.subr.mxu0 0.0
    %387 = vmatpush1.msra.mxu0 0.0
    %388 = vmatprep.subr.mxu0 0.0
    %389 = vmatpush1.msra.mxu0 0.0
    %390 = vmatprep.subr.mxu0 0.0
    %391 = vmatpush1.msra.mxu0 0.0
    %392 = vmatprep.subr.mxu0 0.0
    %393 = vmatpush1.msra.mxu0 0.0
    %394 = vmatprep.subr.mxu0 0.0
    %395 = vmatpush1.msra.mxu0 0.0
    %396 = vmatprep.subr.mxu0 0.0
    %397 = vmatpush1.msra.mxu0 0.0
    %398 = vmatprep.subr.mxu0 0.0
    %399 = vmatpush1.msra.mxu0 0.0
    %400 = vmatprep.subr.mxu0 0.0
    %401 = vmatpush1.msra.mxu0 0.0
    %402 = vmatprep.subr.mxu0 0.0
    %403 = vmatpush1.msra.mxu0 0.0
    %404 = vmatprep.subr.mxu0 0.0
    %405 = vmatpush1.msra.mxu0 0.0
    %406 = vmatprep.subr.mxu0 0.0
    %407 = vmatpush1.msra.mxu0 %v371
    %408 = vmatprep.subr.mxu0 0.0
    %409 = vmatpush2.msra.mxu0 0.0
    %410 = vmatprep.subr.mxu0 0.0
    %411 = vmatpush2.msra.mxu0 0.0
    %412 = vmatprep.subr.mxu0 0.0
    %413 = vmatpush2.msra.mxu0 0.0
    %414 = vmatprep.subr.mxu0 0.0
    %415 = vmatpush2.msra.mxu0 0.0
    %416 = vmatprep.subr.mxu0 0.0
    %417 = vmatpush2.msra.mxu0 0.0
    %418 = vmatprep.subr.mxu0 0.0
    %419 = vmatpush2.msra.mxu0 0.0
    %420 = vmatprep.subr.mxu0 0.0
    %421 = vmatpush2.msra.mxu0 0.0
    %422 = vmatprep.subr.mxu0 0.0
    %423 = vmatpush2.msra.mxu0 0.0
    %424 = vmatprep.subr.mxu0 0.0
    %425 = vmatpush2.msra.mxu0 0.0
    %426 = vmatprep.subr.mxu0 0.0
    %427 = vmatpush2.msra.mxu0 0.0
    %428 = vmatprep.subr.mxu0 0.0
    %429 = vmatpush2.msra.mxu0 0.0
    %430 = vmatprep.subr.mxu0 0.0
    %431 = vmatpush2.msra.mxu0 0.0
    %432 = vmatprep.subr.mxu0 0.0
    %433 = vmatpush2.msra.mxu0 0.0
    %434 = vmatprep.subr.mxu0 0.0
    %435 = vmatpush2.msra.mxu0 0.0
    %436 = vmatprep.subr.mxu0 0.0
    %437 = vmatpush2.msra.mxu0 0.0
    %438 = vmatprep.subr.mxu0 0.0
    %439 = vmatpush2.msra.mxu0 0.0
    %440 = vmatprep.mubr.f32.mxu0 0.0
    %441 = vmatmul.mubr.f32.gmra.mxu0 %v374
    %v442 = vpop.f32.mrf.mxu0
    %v443 = vadd.f32 0.0, %v442
    %v444 = vpop.f32.mrf.mxu0
    %445 = vdwg.mxu0
    %v446 = vld [vmem:[%s3 + $0x8] sm:$0xff]
    %v448 = vsel %vm117, %v443, 0
    %450 = vmatprep.subr.mxu0 0.0
    %451 = vmatpush1.msra.mxu0 0.0
    %452 = vmatprep.subr.mxu0 0.0
    %453 = vmatpush1.msra.mxu0 0.0
    %454 = vmatprep.subr.mxu0 0.0
    %455 = vmatpush1.msra.mxu0 0.0
    %456 = vmatprep.subr.mxu0 0.0
    %457 = vmatpush1.msra.mxu0 0.0
    %458 = vmatprep.subr.mxu0 0.0
    %459 = vmatpush1.msra.mxu0 0.0
    %460 = vmatprep.subr.mxu0 0.0
    %461 = vmatpush1.msra.mxu0 0.0
    %462 = vmatprep.subr.mxu0 0.0
    %463 = vmatpush1.msra.mxu0 0.0
    %464 = vmatprep.subr.mxu0 0.0
    %465 = vmatpush1.msra.mxu0 0.0
    %466 = vmatprep.subr.mxu0 0.0
    %467 = vmatpush1.msra.mxu0 0.0
    %468 = vmatprep.subr.mxu0 0.0
    %469 = vmatpush1.msra.mxu0 0.0
    %470 = vmatprep.subr.mxu0 0.0
    %471 = vmatpush1.msra.mxu0 0.0
    %472 = vmatprep.subr.mxu0 0.0
    %473 = vmatpush1.msra.mxu0 0.0
    %474 = vmatprep.subr.mxu0 0.0
    %475 = vmatpush1.msra.mxu0 0.0
    %476 = vmatprep.subr.mxu0 0.0
    %477 = vmatpush1.msra.mxu0 0.0
    %478 = vmatprep.subr.mxu0 0.0
    %479 = vmatpush1.msra.mxu0 0.0
    %480 = vmatprep.subr.mxu0 0.0
    %481 = vmatpush1.msra.mxu0 %v446
    %482 = vmatprep.subr.mxu0 0.0
    %483 = vmatpush2.msra.mxu0 0.0
    %484 = vmatprep.subr.mxu0 0.0
    %485 = vmatpush2.msra.mxu0 0.0
    %486 = vmatprep.subr.mxu0 0.0
    %487 = vmatpush2.msra.mxu0 0.0
    %488 = vmatprep.subr.mxu0 0.0
    %489 = vmatpush2.msra.mxu0 0.0
    %490 = vmatprep.subr.mxu0 0.0
    %491 = vmatpush2.msra.mxu0 0.0
    %492 = vmatprep.subr.mxu0 0.0
    %493 = vmatpush2.msra.mxu0 0.0
    %494 = vmatprep.subr.mxu0 0.0
    %495 = vmatpush2.msra.mxu0 0.0
    %496 = vmatprep.subr.mxu0 0.0
    %497 = vmatpush2.msra.mxu0 0.0
    %498 = vmatprep.subr.mxu0 0.0
    %499 = vmatpush2.msra.mxu0 0.0
    %500 = vmatprep.subr.mxu0 0.0
    %501 = vmatpush2.msra.mxu0 0.0
    %502 = vmatprep.subr.mxu0 0.0
    %503 = vmatpush2.msra.mxu0 0.0
    %504 = vmatprep.subr.mxu0 0.0
    %505 = vmatpush2.msra.mxu0 0.0
    %506 = vmatprep.subr.mxu0 0.0
    %507 = vmatpush2.msra.mxu0 0.0
    %508 = vmatprep.subr.mxu0 0.0
    %509 = vmatpush2.msra.mxu0 0.0
    %510 = vmatprep.subr.mxu0 0.0
    %511 = vmatpush2.msra.mxu0 0.0
    %512 = vmatprep.subr.mxu0 0.0
    %513 = vmatpush2.msra.mxu0 0.0
    %514 = vmatprep.mubr.f32.mxu0 0.0
    %515 = vmatmul.mubr.f32.gmra.mxu0 %v448
    %v516 = vpop.f32.mrf.mxu0
    %v517 = vadd.f32 0.0, %v516
    %v518 = vpop.f32.mrf.mxu0
    %519 = vdwg.mxu0
    %v521 = vsel %vm117, %v277, 0
    %523 = vmatprep.subr.mxu0 0.0
    %524 = vmatpush1.msra.mxu0 0.0
    %525 = vmatprep.subr.mxu0 0.0
    %526 = vmatpush1.msra.mxu0 0.0
    %527 = vmatprep.subr.mxu0 0.0
    %528 = vmatpush1.msra.mxu0 0.0
    %529 = vmatprep.subr.mxu0 0.0
    %530 = vmatpush1.msra.mxu0 0.0
    %531 = vmatprep.subr.mxu0 0.0
    %532 = vmatpush1.msra.mxu0 0.0
    %533 = vmatprep.subr.mxu0 0.0
    %534 = vmatpush1.msra.mxu0 0.0
    %535 = vmatprep.subr.mxu0 0.0
    %536 = vmatpush1.msra.mxu0 0.0
    %537 = vmatprep.subr.mxu0 0.0
    %538 = vmatpush1.msra.mxu0 0.0
    %539 = vmatprep.subr.mxu0 0.0
    %540 = vmatpush1.msra.mxu0 0.0
    %541 = vmatprep.subr.mxu0 0.0
    %542 = vmatpush1.msra.mxu0 0.0
    %543 = vmatprep.subr.mxu0 0.0
    %544 = vmatpush1.msra.mxu0 0.0
    %545 = vmatprep.subr.mxu0 0.0
    %546 = vmatpush1.msra.mxu0 0.0
    %547 = vmatprep.subr.mxu0 0.0
    %548 = vmatpush1.msra.mxu0 0.0
    %549 = vmatprep.subr.mxu0 0.0
    %550 = vmatpush1.msra.mxu0 0.0
    %551 = vmatprep.subr.mxu0 0.0
    %552 = vmatpush1.msra.mxu0 0.0
    %553 = vmatprep.subr.mxu0 0.0
    %554 = vmatpush1.msra.mxu0 %v280
    %555 = vmatprep.subr.mxu0 0.0
    %556 = vmatpush2.msra.mxu0 0.0
    %557 = vmatprep.subr.mxu0 0.0
    %558 = vmatpush2.msra.mxu0 0.0
    %559 = vmatprep.subr.mxu0 0.0
    %560 = vmatpush2.msra.mxu0 0.0
    %561 = vmatprep.subr.mxu0 0.0
    %562 = vmatpush2.msra.mxu0 0.0
    %563 = vmatprep.subr.mxu0 0.0
    %564 = vmatpush2.msra.mxu0 0.0
    %565 = vmatprep.subr.mxu0 0.0
    %566 = vmatpush2.msra.mxu0 0.0
    %567 = vmatprep.subr.mxu0 0.0
    %568 = vmatpush2.msra.mxu0 0.0
    %569 = vmatprep.subr.mxu0 0.0
    %570 = vmatpush2.msra.mxu0 0.0
    %571 = vmatprep.subr.mxu0 0.0
    %572 = vmatpush2.msra.mxu0 0.0
    %573 = vmatprep.subr.mxu0 0.0
    %574 = vmatpush2.msra.mxu0 0.0
    %575 = vmatprep.subr.mxu0 0.0
    %576 = vmatpush2.msra.mxu0 0.0
    %577 = vmatprep.subr.mxu0 0.0
    %578 = vmatpush2.msra.mxu0 0.0
    %579 = vmatprep.subr.mxu0 0.0
    %580 = vmatpush2.msra.mxu0 0.0
    %581 = vmatprep.subr.mxu0 0.0
    %582 = vmatpush2.msra.mxu0 0.0
    %583 = vmatprep.subr.mxu0 0.0
    %584 = vmatpush2.msra.mxu0 0.0
    %585 = vmatprep.subr.mxu0 0.0
    %586 = vmatpush2.msra.mxu0 0.0
    %587 = vmatprep.mubr.f32.mxu0 0.0
    %588 = vmatmul.mubr.f32.gmra.mxu0 %v521
    %v589 = vpop.f32.mrf.mxu0
    %v590 = vadd.f32 %v517, %v589
    %v591 = vpop.f32.mrf.mxu0
    %592 = vdwg.mxu0
    %593 = vrot.lane.b32.xlu0 %v111, 112
    %v594 = vpop.permute.xlu0 %593
    %595 = vrot.lane.b32.xlu0 %v103, 80
    %v596 = vpop.permute.xlu0 %595
    %v597 = vsel %vm117, %v594, 0
    %v599 = vsel %vm117, %v596, 0
    %601 = vmatprep.subr.mxu0 0.0
    %602 = vmatpush1.xpose.msra.mxu0 0.0
    %603 = vmatprep.subr.mxu0 0.0
    %604 = vmatpush1.xpose.msra.mxu0 0.0
    %605 = vmatprep.subr.mxu0 0.0
    %606 = vmatpush1.xpose.msra.mxu0 0.0
    %607 = vmatprep.subr.mxu0 0.0
    %608 = vmatpush1.xpose.msra.mxu0 0.0
    %609 = vmatprep.subr.mxu0 0.0
    %610 = vmatpush1.xpose.msra.mxu0 0.0
    %611 = vmatprep.subr.mxu0 0.0
    %612 = vmatpush1.xpose.msra.mxu0 0.0
    %613 = vmatprep.subr.mxu0 0.0
    %614 = vmatpush1.xpose.msra.mxu0 0.0
    %615 = vmatprep.subr.mxu0 0.0
    %616 = vmatpush1.xpose.msra.mxu0 0.0
    %617 = vmatprep.subr.mxu0 0.0
    %618 = vmatpush1.xpose.msra.mxu0 0.0
    %619 = vmatprep.subr.mxu0 0.0
    %620 = vmatpush1.xpose.msra.mxu0 0.0
    %621 = vmatprep.subr.mxu0 0.0
    %622 = vmatpush1.xpose.msra.mxu0 0.0
    %623 = vmatprep.subr.mxu0 0.0
    %624 = vmatpush1.xpose.msra.mxu0 0.0
    %625 = vmatprep.subr.mxu0 0.0
    %626 = vmatpush1.xpose.msra.mxu0 0.0
    %627 = vmatprep.subr.mxu0 0.0
    %628 = vmatpush1.xpose.msra.mxu0 0.0
    %629 = vmatprep.subr.mxu0 0.0
    %630 = vmatpush1.xpose.msra.mxu0 0.0
    %631 = vmatprep.subr.mxu0 0.0
    %632 = vmatpush1.xpose.msra.mxu0 %v599
    %633 = vmatprep.subr.mxu0 0.0
    %634 = vmatpush2.xpose.msra.mxu0 0.0
    %635 = vmatprep.subr.mxu0 0.0
    %636 = vmatpush2.xpose.msra.mxu0 0.0
    %637 = vmatprep.subr.mxu0 0.0
    %638 = vmatpush2.xpose.msra.mxu0 0.0
    %639 = vmatprep.subr.mxu0 0.0
    %640 = vmatpush2.xpose.msra.mxu0 0.0
    %641 = vmatprep.subr.mxu0 0.0
    %642 = vmatpush2.xpose.msra.mxu0 0.0
    %643 = vmatprep.subr.mxu0 0.0
    %644 = vmatpush2.xpose.msra.mxu0 0.0
    %645 = vmatprep.subr.mxu0 0.0
    %646 = vmatpush2.xpose.msra.mxu0 0.0
    %647 = vmatprep.subr.mxu0 0.0
    %648 = vmatpush2.xpose.msra.mxu0 0.0
    %649 = vmatprep.subr.mxu0 0.0
    %650 = vmatpush2.xpose.msra.mxu0 0.0
    %651 = vmatprep.subr.mxu0 0.0
    %652 = vmatpush2.xpose.msra.mxu0 0.0
    %653 = vmatprep.subr.mxu0 0.0
    %654 = vmatpush2.xpose.msra.mxu0 0.0
    %655 = vmatprep.subr.mxu0 0.0
    %656 = vmatpush2.xpose.msra.mxu0 0.0
    %657 = vmatprep.subr.mxu0 0.0
    %658 = vmatpush2.xpose.msra.mxu0 0.0
    %659 = vmatprep.subr.mxu0 0.0
    %660 = vmatpush2.xpose.msra.mxu0 0.0
    %661 = vmatprep.subr.mxu0 0.0
    %662 = vmatpush2.xpose.msra.mxu0 0.0
    %663 = vmatprep.subr.mxu0 0.0
    %664 = vmatpush2.xpose.msra.mxu0 0.0
    %665 = vmatprep.mubr.f32.mxu0 0.0
    %666 = vmatmul.mubr.f32.gmra.mxu0 %v597
    %v667 = vpop.f32.mrf.mxu0
    %v668 = vadd.f32 %v113, %v667
    %v669 = vpop.f32.mrf.mxu0
    %670 = vdwg.mxu0
    %v671 = vsel %vm117, %v668, -inf
    %672 = vmax.xlane.f32.xlu0 %v671
    %v673 = vpop.xlane.xlu0 %672
    %v674 = vsub.f32 %v668, %v673
    %v675 = vmul.f32 %v674, 1.442695
    %v676 = vpow.pop %v675
    %v677 = vsel %vm117, %v676, 0.0
    %678 = vadd.xlane.f32.xlu0 %v677
    %v679 = vpop.xlane.xlu0 %678
    %v680 = vrcp.pop %v679
    %v681 = vmul.f32 %v676, %v680
    %682 = vrot.lane.b32.xlu0 %v103, 48
    %v683 = vpop.permute.xlu0 %682
    %v686 = vsel %vm117, %v681, 0
    %688 = vmatprep.subr.mxu0 0.0
    %689 = vmatpush1.msra.mxu0 0.0
    %690 = vmatprep.subr.mxu0 0.0
    %691 = vmatpush1.msra.mxu0 0.0
    %692 = vmatprep.subr.mxu0 0.0
    %693 = vmatpush1.msra.mxu0 0.0
    %694 = vmatprep.subr.mxu0 0.0
    %695 = vmatpush1.msra.mxu0 0.0
    %696 = vmatprep.subr.mxu0 0.0
    %697 = vmatpush1.msra.mxu0 0.0
    %698 = vmatprep.subr.mxu0 0.0
    %699 = vmatpush1.msra.mxu0 0.0
    %700 = vmatprep.subr.mxu0 0.0
    %701 = vmatpush1.msra.mxu0 0.0
    %702 = vmatprep.subr.mxu0 0.0
    %703 = vmatpush1.msra.mxu0 0.0
    %704 = vmatprep.subr.mxu0 0.0
    %705 = vmatpush1.msra.mxu0 0.0
    %706 = vmatprep.subr.mxu0 0.0
    %707 = vmatpush1.msra.mxu0 0.0
    %708 = vmatprep.subr.mxu0 0.0
    %709 = vmatpush1.msra.mxu0 0.0
    %710 = vmatprep.subr.mxu0 0.0
    %711 = vmatpush1.msra.mxu0 0.0
    %712 = vmatprep.subr.mxu0 0.0
    %713 = vmatpush1.msra.mxu0 0.0
    %714 = vmatprep.subr.mxu0 0.0
    %715 = vmatpush1.msra.mxu0 0.0
    %716 = vmatprep.subr.mxu0 0.0
    %717 = vmatpush1.msra.mxu0 0.0
    %718 = vmatprep.subr.mxu0 0.0
    %719 = vmatpush1.msra.mxu0 %v683
    %720 = vmatprep.subr.mxu0 0.0
    %721 = vmatpush2.msra.mxu0 0.0
    %722 = vmatprep.subr.mxu0 0.0
    %723 = vmatpush2.msra.mxu0 0.0
    %724 = vmatprep.subr.mxu0 0.0
    %725 = vmatpush2.msra.mxu0 0.0
    %726 = vmatprep.subr.mxu0 0.0
    %727 = vmatpush2.msra.mxu0 0.0
    %728 = vmatprep.subr.mxu0 0.0
    %729 = vmatpush2.msra.mxu0 0.0
    %730 = vmatprep.subr.mxu0 0.0
    %731 = vmatpush2.msra.mxu0 0.0
    %732 = vmatprep.subr.mxu0 0.0
    %733 = vmatpush2.msra.mxu0 0.0
    %734 = vmatprep.subr.mxu0 0.0
    %735 = vmatpush2.msra.mxu0 0.0
    %736 = vmatprep.subr.mxu0 0.0
    %737 = vmatpush2.msra.mxu0 0.0
    %738 = vmatprep.subr.mxu0 0.0
    %739 = vmatpush2.msra.mxu0 0.0
    %740 = vmatprep.subr.mxu0 0.0
    %741 = vmatpush2.msra.mxu0 0.0
    %742 = vmatprep.subr.mxu0 0.0
    %743 = vmatpush2.msra.mxu0 0.0
    %744 = vmatprep.subr.mxu0 0.0
    %745 = vmatpush2.msra.mxu0 0.0
    %746 = vmatprep.subr.mxu0 0.0
    %747 = vmatpush2.msra.mxu0 0.0
    %748 = vmatprep.subr.mxu0 0.0
    %749 = vmatpush2.msra.mxu0 0.0
    %750 = vmatprep.subr.mxu0 0.0
    %751 = vmatpush2.msra.mxu0 0.0
    %752 = vmatprep.mubr.f32.mxu0 0.0
    %753 = vmatmul.mubr.f32.gmra.mxu0 %v686
    %v754 = vpop.f32.mrf.mxu0
    %v755 = vadd.f32 0.0, %v754
    %v756 = vpop.f32.mrf.mxu0
    %757 = vdwg.mxu0
    %v758 = vld [vmem:[%s3 + $0x10] sm:$0xff]
    %v760 = vsel %vm117, %v755, 0
    %762 = vmatprep.subr.mxu0 0.0
    %763 = vmatpush1.msra.mxu0 0.0
    %764 = vmatprep.subr.mxu0 0.0
    %765 = vmatpush1.msra.mxu0 0.0
    %766 = vmatprep.subr.mxu0 0.0
    %767 = vmatpush1.msra.mxu0 0.0
    %768 = vmatprep.subr.mxu0 0.0
    %769 = vmatpush1.msra.mxu0 0.0
    %770 = vmatprep.subr.mxu0 0.0
    %771 = vmatpush1.msra.mxu0 0.0
    %772 = vmatprep.subr.mxu0 0.0
    %773 = vmatpush1.msra.mxu0 0.0
    %774 = vmatprep.subr.mxu0 0.0
    %775 = vmatpush1.msra.mxu0 0.0
    %776 = vmatprep.subr.mxu0 0.0
    %777 = vmatpush1.msra.mxu0 0.0
    %778 = vmatprep.subr.mxu0 0.0
    %779 = vmatpush1.msra.mxu0 0.0
    %780 = vmatprep.subr.mxu0 0.0
    %781 = vmatpush1.msra.mxu0 0.0
    %782 = vmatprep.subr.mxu0 0.0
    %783 = vmatpush1.msra.mxu0 0.0
    %784 = vmatprep.subr.mxu0 0.0
    %785 = vmatpush1.msra.mxu0 0.0
    %786 = vmatprep.subr.mxu0 0.0
    %787 = vmatpush1.msra.mxu0 0.0
    %788 = vmatprep.subr.mxu0 0.0
    %789 = vmatpush1.msra.mxu0 0.0
    %790 = vmatprep.subr.mxu0 0.0
    %791 = vmatpush1.msra.mxu0 0.0
    %792 = vmatprep.subr.mxu0 0.0
    %793 = vmatpush1.msra.mxu0 %v758
    %794 = vmatprep.subr.mxu0 0.0
    %795 = vmatpush2.msra.mxu0 0.0
    %796 = vmatprep.subr.mxu0 0.0
    %797 = vmatpush2.msra.mxu0 0.0
    %798 = vmatprep.subr.mxu0 0.0
    %799 = vmatpush2.msra.mxu0 0.0
    %800 = vmatprep.subr.mxu0 0.0
    %801 = vmatpush2.msra.mxu0 0.0
    %802 = vmatprep.subr.mxu0 0.0
    %803 = vmatpush2.msra.mxu0 0.0
    %804 = vmatprep.subr.mxu0 0.0
    %805 = vmatpush2.msra.mxu0 0.0
    %806 = vmatprep.subr.mxu0 0.0
    %807 = vmatpush2.msra.mxu0 0.0
    %808 = vmatprep.subr.mxu0 0.0
    %809 = vmatpush2.msra.mxu0 0.0
    %810 = vmatprep.subr.mxu0 0.0
    %811 = vmatpush2.msra.mxu0 0.0
    %812 = vmatprep.subr.mxu0 0.0
    %813 = vmatpush2.msra.mxu0 0.0
    %814 = vmatprep.subr.mxu0 0.0
    %815 = vmatpush2.msra.mxu0 0.0
    %816 = vmatprep.subr.mxu0 0.0
    %817 = vmatpush2.msra.mxu0 0.0
    %818 = vmatprep.subr.mxu0 0.0
    %819 = vmatpush2.msra.mxu0 0.0
    %820 = vmatprep.subr.mxu0 0.0
    %821 = vmatpush2.msra.mxu0 0.0
    %822 = vmatprep.subr.mxu0 0.0
    %823 = vmatpush2.msra.mxu0 0.0
    %824 = vmatprep.subr.mxu0 0.0
    %825 = vmatpush2.msra.mxu0 0.0
    %826 = vmatprep.mubr.f32.mxu0 0.0
    %827 = vmatmul.mubr.f32.gmra.mxu0 %v760
    %v828 = vpop.f32.mrf.mxu0
    %v829 = vadd.f32 0.0, %v828
    %v830 = vpop.f32.mrf.mxu0
    %831 = vdwg.mxu0
    %v832 = vadd.f32 %v590, %v829
    %833 = vrot.lane.b32.xlu0 %v111, 104
    %v834 = vpop.permute.xlu0 %833
    %835 = vrot.lane.b32.xlu0 %v103, 72
    %v836 = vpop.permute.xlu0 %835
    %v837 = vsel %vm117, %v834, 0
    %v839 = vsel %vm117, %v836, 0
    %841 = vmatprep.subr.mxu0 0.0
    %842 = vmatpush1.xpose.msra.mxu0 0.0
    %843 = vmatprep.subr.mxu0 0.0
    %844 = vmatpush1.xpose.msra.mxu0 0.0
    %845 = vmatprep.subr.mxu0 0.0
    %846 = vmatpush1.xpose.msra.mxu0 0.0
    %847 = vmatprep.subr.mxu0 0.0
    %848 = vmatpush1.xpose.msra.mxu0 0.0
    %849 = vmatprep.subr.mxu0 0.0
    %850 = vmatpush1.xpose.msra.mxu0 0.0
    %851 = vmatprep.subr.mxu0 0.0
    %852 = vmatpush1.xpose.msra.mxu0 0.0
    %853 = vmatprep.subr.mxu0 0.0
    %854 = vmatpush1.xpose.msra.mxu0 0.0
    %855 = vmatprep.subr.mxu0 0.0
    %856 = vmatpush1.xpose.msra.mxu0 0.0
    %857 = vmatprep.subr.mxu0 0.0
    %858 = vmatpush1.xpose.msra.mxu0 0.0
    %859 = vmatprep.subr.mxu0 0.0
    %860 = vmatpush1.xpose.msra.mxu0 0.0
    %861 = vmatprep.subr.mxu0 0.0
    %862 = vmatpush1.xpose.msra.mxu0 0.0
    %863 = vmatprep.subr.mxu0 0.0
    %864 = vmatpush1.xpose.msra.mxu0 0.0
    %865 = vmatprep.subr.mxu0 0.0
    %866 = vmatpush1.xpose.msra.mxu0 0.0
    %867 = vmatprep.subr.mxu0 0.0
    %868 = vmatpush1.xpose.msra.mxu0 0.0
    %869 = vmatprep.subr.mxu0 0.0
    %870 = vmatpush1.xpose.msra.mxu0 0.0
    %871 = vmatprep.subr.mxu0 0.0
    %872 = vmatpush1.xpose.msra.mxu0 %v839
    %873 = vmatprep.subr.mxu0 0.0
    %874 = vmatpush2.xpose.msra.mxu0 0.0
    %875 = vmatprep.subr.mxu0 0.0
    %876 = vmatpush2.xpose.msra.mxu0 0.0
    %877 = vmatprep.subr.mxu0 0.0
    %878 = vmatpush2.xpose.msra.mxu0 0.0
    %879 = vmatprep.subr.mxu0 0.0
    %880 = vmatpush2.xpose.msra.mxu0 0.0
    %881 = vmatprep.subr.mxu0 0.0
    %882 = vmatpush2.xpose.msra.mxu0 0.0
    %883 = vmatprep.subr.mxu0 0.0
    %884 = vmatpush2.xpose.msra.mxu0 0.0
    %885 = vmatprep.subr.mxu0 0.0
    %886 = vmatpush2.xpose.msra.mxu0 0.0
    %887 = vmatprep.subr.mxu0 0.0
    %888 = vmatpush2.xpose.msra.mxu0 0.0
    %889 = vmatprep.subr.mxu0 0.0
    %890 = vmatpush2.xpose.msra.mxu0 0.0
    %891 = vmatprep.subr.mxu0 0.0
    %892 = vmatpush2.xpose.msra.mxu0 0.0
    %893 = vmatprep.subr.mxu0 0.0
    %894 = vmatpush2.xpose.msra.mxu0 0.0
    %895 = vmatprep.subr.mxu0 0.0
    %896 = vmatpush2.xpose.msra.mxu0 0.0
    %897 = vmatprep.subr.mxu0 0.0
    %898 = vmatpush2.xpose.msra.mxu0 0.0
    %899 = vmatprep.subr.mxu0 0.0
    %900 = vmatpush2.xpose.msra.mxu0 0.0
    %901 = vmatprep.subr.mxu0 0.0
    %902 = vmatpush2.xpose.msra.mxu0 0.0
    %903 = vmatprep.subr.mxu0 0.0
    %904 = vmatpush2.xpose.msra.mxu0 0.0
    %905 = vmatprep.mubr.f32.mxu0 0.0
    %906 = vmatmul.mubr.f32.gmra.mxu0 %v837
    %v907 = vpop.f32.mrf.mxu0
    %v908 = vadd.f32 %v113, %v907
    %v909 = vpop.f32.mrf.mxu0
    %910 = vdwg.mxu0
    %v911 = vsel %vm117, %v908, -inf
    %912 = vmax.xlane.f32.xlu0 %v911
    %v913 = vpop.xlane.xlu0 %912
    %v914 = vsub.f32 %v908, %v913
    %v915 = vmul.f32 %v914, 1.442695
    %v916 = vpow.pop %v915
    %v917 = vsel %vm117, %v916, 0.0
    %918 = vadd.xlane.f32.xlu0 %v917
    %v919 = vpop.xlane.xlu0 %918
    %v920 = vrcp.pop %v919
    %v921 = vmul.f32 %v916, %v920
    %922 = vrot.lane.b32.xlu0 %v103, 40
    %v923 = vpop.permute.xlu0 %922
    %v926 = vsel %vm117, %v921, 0
    %928 = vmatprep.subr.mxu0 0.0
    %929 = vmatpush1.msra.mxu0 0.0
    %930 = vmatprep.subr.mxu0 0.0
    %931 = vmatpush1.msra.mxu0 0.0
    %932 = vmatprep.subr.mxu0 0.0
    %933 = vmatpush1.msra.mxu0 0.0
    %934 = vmatprep.subr.mxu0 0.0
    %935 = vmatpush1.msra.mxu0 0.0
    %936 = vmatprep.subr.mxu0 0.0
    %937 = vmatpush1.msra.mxu0 0.0
    %938 = vmatprep.subr.mxu0 0.0
    %939 = vmatpush1.msra.mxu0 0.0
    %940 = vmatprep.subr.mxu0 0.0
    %941 = vmatpush1.msra.mxu0 0.0
    %942 = vmatprep.subr.mxu0 0.0
    %943 = vmatpush1.msra.mxu0 0.0
    %944 = vmatprep.subr.mxu0 0.0
    %945 = vmatpush1.msra.mxu0 0.0
    %946 = vmatprep.subr.mxu0 0.0
    %947 = vmatpush1.msra.mxu0 0.0
    %948 = vmatprep.subr.mxu0 0.0
    %949 = vmatpush1.msra.mxu0 0.0
    %950 = vmatprep.subr.mxu0 0.0
    %951 = vmatpush1.msra.mxu0 0.0
    %952 = vmatprep.subr.mxu0 0.0
    %953 = vmatpush1.msra.mxu0 0.0
    %954 = vmatprep.subr.mxu0 0.0
    %955 = vmatpush1.msra.mxu0 0.0
    %956 = vmatprep.subr.mxu0 0.0
    %957 = vmatpush1.msra.mxu0 0.0
    %958 = vmatprep.subr.mxu0 0.0
    %959 = vmatpush1.msra.mxu0 %v923
    %960 = vmatprep.subr.mxu0 0.0
    %961 = vmatpush2.msra.mxu0 0.0
    %962 = vmatprep.subr.mxu0 0.0
    %963 = vmatpush2.msra.mxu0 0.0
    %964 = vmatprep.subr.mxu0 0.0
    %965 = vmatpush2.msra.mxu0 0.0
    %966 = vmatprep.subr.mxu0 0.0
    %967 = vmatpush2.msra.mxu0 0.0
    %968 = vmatprep.subr.mxu0 0.0
    %969 = vmatpush2.msra.mxu0 0.0
    %970 = vmatprep.subr.mxu0 0.0
    %971 = vmatpush2.msra.mxu0 0.0
    %972 = vmatprep.subr.mxu0 0.0
    %973 = vmatpush2.msra.mxu0 0.0
    %974 = vmatprep.subr.mxu0 0.0
    %975 = vmatpush2.msra.mxu0 0.0
    %976 = vmatprep.subr.mxu0 0.0
    %977 = vmatpush2.msra.mxu0 0.0
    %978 = vmatprep.subr.mxu0 0.0
    %979 = vmatpush2.msra.mxu0 0.0
    %980 = vmatprep.subr.mxu0 0.0
    %981 = vmatpush2.msra.mxu0 0.0
    %982 = vmatprep.subr.mxu0 0.0
    %983 = vmatpush2.msra.mxu0 0.0
    %984 = vmatprep.subr.mxu0 0.0
    %985 = vmatpush2.msra.mxu0 0.0
    %986 = vmatprep.subr.mxu0 0.0
    %987 = vmatpush2.msra.mxu0 0.0
    %988 = vmatprep.subr.mxu0 0.0
    %989 = vmatpush2.msra.mxu0 0.0
    %990 = vmatprep.subr.mxu0 0.0
    %991 = vmatpush2.msra.mxu0 0.0
    %992 = vmatprep.mubr.f32.mxu0 0.0
    %993 = vmatmul.mubr.f32.gmra.mxu0 %v926
    %v994 = vpop.f32.mrf.mxu0
    %v995 = vadd.f32 0.0, %v994
    %v996 = vpop.f32.mrf.mxu0
    %997 = vdwg.mxu0
    %v998 = vld [vmem:[%s3 + $0x18] sm:$0xff]
    %v1000 = vsel %vm117, %v995, 0
    %1002 = vmatprep.subr.mxu0 0.0
    %1003 = vmatpush1.msra.mxu0 0.0
    %1004 = vmatprep.subr.mxu0 0.0
    %1005 = vmatpush1.msra.mxu0 0.0
    %1006 = vmatprep.subr.mxu0 0.0
    %1007 = vmatpush1.msra.mxu0 0.0
    %1008 = vmatprep.subr.mxu0 0.0
    %1009 = vmatpush1.msra.mxu0 0.0
    %1010 = vmatprep.subr.mxu0 0.0
    %1011 = vmatpush1.msra.mxu0 0.0
    %1012 = vmatprep.subr.mxu0 0.0
    %1013 = vmatpush1.msra.mxu0 0.0
    %1014 = vmatprep.subr.mxu0 0.0
    %1015 = vmatpush1.msra.mxu0 0.0
    %1016 = vmatprep.subr.mxu0 0.0
    %1017 = vmatpush1.msra.mxu0 0.0
    %1018 = vmatprep.subr.mxu0 0.0
    %1019 = vmatpush1.msra.mxu0 0.0
    %1020 = vmatprep.subr.mxu0 0.0
    %1021 = vmatpush1.msra.mxu0 0.0
    %1022 = vmatprep.subr.mxu0 0.0
    %1023 = vmatpush1.msra.mxu0 0.0
    %1024 = vmatprep.subr.mxu0 0.0
    %1025 = vmatpush1.msra.mxu0 0.0
    %1026 = vmatprep.subr.mxu0 0.0
    %1027 = vmatpush1.msra.mxu0 0.0
    %1028 = vmatprep.subr.mxu0 0.0
    %1029 = vmatpush1.msra.mxu0 0.0
    %1030 = vmatprep.subr.mxu0 0.0
    %1031 = vmatpush1.msra.mxu0 0.0
    %1032 = vmatprep.subr.mxu0 0.0
    %1033 = vmatpush1.msra.mxu0 %v998
    %1034 = vmatprep.subr.mxu0 0.0
    %1035 = vmatpush2.msra.mxu0 0.0
    %1036 = vmatprep.subr.mxu0 0.0
    %1037 = vmatpush2.msra.mxu0 0.0
    %1038 = vmatprep.subr.mxu0 0.0
    %1039 = vmatpush2.msra.mxu0 0.0
    %1040 = vmatprep.subr.mxu0 0.0
    %1041 = vmatpush2.msra.mxu0 0.0
    %1042 = vmatprep.subr.mxu0 0.0
    %1043 = vmatpush2.msra.mxu0 0.0
    %1044 = vmatprep.subr.mxu0 0.0
    %1045 = vmatpush2.msra.mxu0 0.0
    %1046 = vmatprep.subr.mxu0 0.0
    %1047 = vmatpush2.msra.mxu0 0.0
    %1048 = vmatprep.subr.mxu0 0.0
    %1049 = vmatpush2.msra.mxu0 0.0
    %1050 = vmatprep.subr.mxu0 0.0
    %1051 = vmatpush2.msra.mxu0 0.0
    %1052 = vmatprep.subr.mxu0 0.0
    %1053 = vmatpush2.msra.mxu0 0.0
    %1054 = vmatprep.subr.mxu0 0.0
    %1055 = vmatpush2.msra.mxu0 0.0
    %1056 = vmatprep.subr.mxu0 0.0
    %1057 = vmatpush2.msra.mxu0 0.0
    %1058 = vmatprep.subr.mxu0 0.0
    %1059 = vmatpush2.msra.mxu0 0.0
    %1060 = vmatprep.subr.mxu0 0.0
    %1061 = vmatpush2.msra.mxu0 0.0
    %1062 = vmatprep.subr.mxu0 0.0
    %1063 = vmatpush2.msra.mxu0 0.0
    %1064 = vmatprep.subr.mxu0 0.0
    %1065 = vmatpush2.msra.mxu0 0.0
    %1066 = vmatprep.mubr.f32.mxu0 0.0
    %1067 = vmatmul.mubr.f32.gmra.mxu0 %v1000
    %v1068 = vpop.f32.mrf.mxu0
    %v1069 = vadd.f32 0.0, %v1068
    %v1070 = vpop.f32.mrf.mxu0
    %1071 = vdwg.mxu0
    %v1072 = vadd.f32 %v832, %v1069
    %s1073 = scalar_lea.vmem %s1, 8
    %v1074 = vld [vmem:[%s1073] sm:$0xff]
    %1076 = vrot.lane.b32.xlu0 %v108, 96
    %v1077 = vpop.permute.xlu0 %1076
    %v1079 = vsel %vm117, %v112, 0
    %v1081 = vsel %vm117, %v1077, 0
    %1083 = vmatprep.subr.mxu0 0.0
    %1084 = vmatpush1.xpose.msra.mxu0 0.0
    %1085 = vmatprep.subr.mxu0 0.0
    %1086 = vmatpush1.xpose.msra.mxu0 0.0
    %1087 = vmatprep.subr.mxu0 0.0
    %1088 = vmatpush1.xpose.msra.mxu0 0.0
    %1089 = vmatprep.subr.mxu0 0.0
    %1090 = vmatpush1.xpose.msra.mxu0 0.0
    %1091 = vmatprep.subr.mxu0 0.0
    %1092 = vmatpush1.xpose.msra.mxu0 0.0
    %1093 = vmatprep.subr.mxu0 0.0
    %1094 = vmatpush1.xpose.msra.mxu0 0.0
    %1095 = vmatprep.subr.mxu0 0.0
    %1096 = vmatpush1.xpose.msra.mxu0 0.0
    %1097 = vmatprep.subr.mxu0 0.0
    %1098 = vmatpush1.xpose.msra.mxu0 0.0
    %1099 = vmatprep.subr.mxu0 0.0
    %1100 = vmatpush1.xpose.msra.mxu0 0.0
    %1101 = vmatprep.subr.mxu0 0.0
    %1102 = vmatpush1.xpose.msra.mxu0 0.0
    %1103 = vmatprep.subr.mxu0 0.0
    %1104 = vmatpush1.xpose.msra.mxu0 0.0
    %1105 = vmatprep.subr.mxu0 0.0
    %1106 = vmatpush1.xpose.msra.mxu0 0.0
    %1107 = vmatprep.subr.mxu0 0.0
    %1108 = vmatpush1.xpose.msra.mxu0 0.0
    %1109 = vmatprep.subr.mxu0 0.0
    %1110 = vmatpush1.xpose.msra.mxu0 0.0
    %1111 = vmatprep.subr.mxu0 0.0
    %1112 = vmatpush1.xpose.msra.mxu0 0.0
    %1113 = vmatprep.subr.mxu0 0.0
    %1114 = vmatpush1.xpose.msra.mxu0 %v1081
    %1115 = vmatprep.subr.mxu0 0.0
    %1116 = vmatpush2.xpose.msra.mxu0 0.0
    %1117 = vmatprep.subr.mxu0 0.0
    %1118 = vmatpush2.xpose.msra.mxu0 0.0
    %1119 = vmatprep.subr.mxu0 0.0
    %1120 = vmatpush2.xpose.msra.mxu0 0.0
    %1121 = vmatprep.subr.mxu0 0.0
    %1122 = vmatpush2.xpose.msra.mxu0 0.0
    %1123 = vmatprep.subr.mxu0 0.0
    %1124 = vmatpush2.xpose.msra.mxu0 0.0
    %1125 = vmatprep.subr.mxu0 0.0
    %1126 = vmatpush2.xpose.msra.mxu0 0.0
    %1127 = vmatprep.subr.mxu0 0.0
    %1128 = vmatpush2.xpose.msra.mxu0 0.0
    %1129 = vmatprep.subr.mxu0 0.0
    %1130 = vmatpush2.xpose.msra.mxu0 0.0
    %1131 = vmatprep.subr.mxu0 0.0
    %1132 = vmatpush2.xpose.msra.mxu0 0.0
    %1133 = vmatprep.subr.mxu0 0.0
    %1134 = vmatpush2.xpose.msra.mxu0 0.0
    %1135 = vmatprep.subr.mxu0 0.0
    %1136 = vmatpush2.xpose.msra.mxu0 0.0
    %1137 = vmatprep.subr.mxu0 0.0
    %1138 = vmatpush2.xpose.msra.mxu0 0.0
    %1139 = vmatprep.subr.mxu0 0.0
    %1140 = vmatpush2.xpose.msra.mxu0 0.0
    %1141 = vmatprep.subr.mxu0 0.0
    %1142 = vmatpush2.xpose.msra.mxu0 0.0
    %1143 = vmatprep.subr.mxu0 0.0
    %1144 = vmatpush2.xpose.msra.mxu0 0.0
    %1145 = vmatprep.subr.mxu0 0.0
    %1146 = vmatpush2.xpose.msra.mxu0 0.0
    %1147 = vmatprep.mubr.f32.mxu0 0.0
    %1148 = vmatmul.mubr.f32.gmra.mxu0 %v1079
    %v1149 = vpop.f32.mrf.mxu0
    %v1150 = vadd.f32 %v1074, %v1149
    %v1151 = vpop.f32.mrf.mxu0
    %1152 = vdwg.mxu0
    %v1153 = vsel %vm117, %v1150, -inf
    %1154 = vmax.xlane.f32.xlu0 %v1153
    %v1155 = vpop.xlane.xlu0 %1154
    %v1156 = vsub.f32 %v1150, %v1155
    %v1157 = vmul.f32 %v1156, 1.442695
    %v1158 = vpow.pop %v1157
    %v1159 = vsel %vm117, %v1158, 0.0
    %1160 = vadd.xlane.f32.xlu0 %v1159
    %v1161 = vpop.xlane.xlu0 %1160
    %v1162 = vrcp.pop %v1161
    %v1163 = vmul.f32 %v1158, %v1162
    %1164 = vrot.lane.b32.xlu0 %v108, 64
    %v1165 = vpop.permute.xlu0 %1164
    %v1168 = vsel %vm117, %v1163, 0
    %1170 = vmatprep.subr.mxu0 0.0
    %1171 = vmatpush1.msra.mxu0 0.0
    %1172 = vmatprep.subr.mxu0 0.0
    %1173 = vmatpush1.msra.mxu0 0.0
    %1174 = vmatprep.subr.mxu0 0.0
    %1175 = vmatpush1.msra.mxu0 0.0
    %1176 = vmatprep.subr.mxu0 0.0
    %1177 = vmatpush1.msra.mxu0 0.0
    %1178 = vmatprep.subr.mxu0 0.0
    %1179 = vmatpush1.msra.mxu0 0.0
    %1180 = vmatprep.subr.mxu0 0.0
    %1181 = vmatpush1.msra.mxu0 0.0
    %1182 = vmatprep.subr.mxu0 0.0
    %1183 = vmatpush1.msra.mxu0 0.0
    %1184 = vmatprep.subr.mxu0 0.0
    %1185 = vmatpush1.msra.mxu0 0.0
    %1186 = vmatprep.subr.mxu0 0.0
    %1187 = vmatpush1.msra.mxu0 0.0
    %1188 = vmatprep.subr.mxu0 0.0
    %1189 = vmatpush1.msra.mxu0 0.0
    %1190 = vmatprep.subr.mxu0 0.0
    %1191 = vmatpush1.msra.mxu0 0.0
    %1192 = vmatprep.subr.mxu0 0.0
    %1193 = vmatpush1.msra.mxu0 0.0
    %1194 = vmatprep.subr.mxu0 0.0
    %1195 = vmatpush1.msra.mxu0 0.0
    %1196 = vmatprep.subr.mxu0 0.0
    %1197 = vmatpush1.msra.mxu0 0.0
    %1198 = vmatprep.subr.mxu0 0.0
    %1199 = vmatpush1.msra.mxu0 0.0
    %1200 = vmatprep.subr.mxu0 0.0
    %1201 = vmatpush1.msra.mxu0 %v1165
    %1202 = vmatprep.subr.mxu0 0.0
    %1203 = vmatpush2.msra.mxu0 0.0
    %1204 = vmatprep.subr.mxu0 0.0
    %1205 = vmatpush2.msra.mxu0 0.0
    %1206 = vmatprep.subr.mxu0 0.0
    %1207 = vmatpush2.msra.mxu0 0.0
    %1208 = vmatprep.subr.mxu0 0.0
    %1209 = vmatpush2.msra.mxu0 0.0
    %1210 = vmatprep.subr.mxu0 0.0
    %1211 = vmatpush2.msra.mxu0 0.0
    %1212 = vmatprep.subr.mxu0 0.0
    %1213 = vmatpush2.msra.mxu0 0.0
    %1214 = vmatprep.subr.mxu0 0.0
    %1215 = vmatpush2.msra.mxu0 0.0
    %1216 = vmatprep.subr.mxu0 0.0
    %1217 = vmatpush2.msra.mxu0 0.0
    %1218 = vmatprep.subr.mxu0 0.0
    %1219 = vmatpush2.msra.mxu0 0.0
    %1220 = vmatprep.subr.mxu0 0.0
    %1221 = vmatpush2.msra.mxu0 0.0
    %1222 = vmatprep.subr.mxu0 0.0
    %1223 = vmatpush2.msra.mxu0 0.0
    %1224 = vmatprep.subr.mxu0 0.0
    %1225 = vmatpush2.msra.mxu0 0.0
    %1226 = vmatprep.subr.mxu0 0.0
    %1227 = vmatpush2.msra.mxu0 0.0
    %1228 = vmatprep.subr.mxu0 0.0
    %1229 = vmatpush2.msra.mxu0 0.0
    %1230 = vmatprep.subr.mxu0 0.0
    %1231 = vmatpush2.msra.mxu0 0.0
    %1232 = vmatprep.subr.mxu0 0.0
    %1233 = vmatpush2.msra.mxu0 0.0
    %1234 = vmatprep.mubr.f32.mxu0 0.0
    %1235 = vmatmul.mubr.f32.gmra.mxu0 %v1168
    %v1236 = vpop.f32.mrf.mxu0
    %v1237 = vadd.f32 0.0, %v1236
    %v1238 = vpop.f32.mrf.mxu0
    %1239 = vdwg.mxu0
    %1240 = vrot.lane.b32.xlu0 %v112, 120
    %v1241 = vpop.permute.xlu0 %1240
    %1242 = vrot.lane.b32.xlu0 %v108, 88
    %v1243 = vpop.permute.xlu0 %1242
    %v1244 = vsel %vm117, %v1241, 0
    %v1246 = vsel %vm117, %v1243, 0
    %1248 = vmatprep.subr.mxu0 0.0
    %1249 = vmatpush1.xpose.msra.mxu0 0.0
    %1250 = vmatprep.subr.mxu0 0.0
    %1251 = vmatpush1.xpose.msra.mxu0 0.0
    %1252 = vmatprep.subr.mxu0 0.0
    %1253 = vmatpush1.xpose.msra.mxu0 0.0
    %1254 = vmatprep.subr.mxu0 0.0
    %1255 = vmatpush1.xpose.msra.mxu0 0.0
    %1256 = vmatprep.subr.mxu0 0.0
    %1257 = vmatpush1.xpose.msra.mxu0 0.0
    %1258 = vmatprep.subr.mxu0 0.0
    %1259 = vmatpush1.xpose.msra.mxu0 0.0
    %1260 = vmatprep.subr.mxu0 0.0
    %1261 = vmatpush1.xpose.msra.mxu0 0.0
    %1262 = vmatprep.subr.mxu0 0.0
    %1263 = vmatpush1.xpose.msra.mxu0 0.0
    %1264 = vmatprep.subr.mxu0 0.0
    %1265 = vmatpush1.xpose.msra.mxu0 0.0
    %1266 = vmatprep.subr.mxu0 0.0
    %1267 = vmatpush1.xpose.msra.mxu0 0.0
    %1268 = vmatprep.subr.mxu0 0.0
    %1269 = vmatpush1.xpose.msra.mxu0 0.0
    %1270 = vmatprep.subr.mxu0 0.0
    %1271 = vmatpush1.xpose.msra.mxu0 0.0
    %1272 = vmatprep.subr.mxu0 0.0
    %1273 = vmatpush1.xpose.msra.mxu0 0.0
    %1274 = vmatprep.subr.mxu0 0.0
    %1275 = vmatpush1.xpose.msra.mxu0 0.0
    %1276 = vmatprep.subr.mxu0 0.0
    %1277 = vmatpush1.xpose.msra.mxu0 0.0
    %1278 = vmatprep.subr.mxu0 0.0
    %1279 = vmatpush1.xpose.msra.mxu0 %v1246
    %1280 = vmatprep.subr.mxu0 0.0
    %1281 = vmatpush2.xpose.msra.mxu0 0.0
    %1282 = vmatprep.subr.mxu0 0.0
    %1283 = vmatpush2.xpose.msra.mxu0 0.0
    %1284 = vmatprep.subr.mxu0 0.0
    %1285 = vmatpush2.xpose.msra.mxu0 0.0
    %1286 = vmatprep.subr.mxu0 0.0
    %1287 = vmatpush2.xpose.msra.mxu0 0.0
    %1288 = vmatprep.subr.mxu0 0.0
    %1289 = vmatpush2.xpose.msra.mxu0 0.0
    %1290 = vmatprep.subr.mxu0 0.0
    %1291 = vmatpush2.xpose.msra.mxu0 0.0
    %1292 = vmatprep.subr.mxu0 0.0
    %1293 = vmatpush2.xpose.msra.mxu0 0.0
    %1294 = vmatprep.subr.mxu0 0.0
    %1295 = vmatpush2.xpose.msra.mxu0 0.0
    %1296 = vmatprep.subr.mxu0 0.0
    %1297 = vmatpush2.xpose.msra.mxu0 0.0
    %1298 = vmatprep.subr.mxu0 0.0
    %1299 = vmatpush2.xpose.msra.mxu0 0.0
    %1300 = vmatprep.subr.mxu0 0.0
    %1301 = vmatpush2.xpose.msra.mxu0 0.0
    %1302 = vmatprep.subr.mxu0 0.0
    %1303 = vmatpush2.xpose.msra.mxu0 0.0
    %1304 = vmatprep.subr.mxu0 0.0
    %1305 = vmatpush2.xpose.msra.mxu0 0.0
    %1306 = vmatprep.subr.mxu0 0.0
    %1307 = vmatpush2.xpose.msra.mxu0 0.0
    %1308 = vmatprep.subr.mxu0 0.0
    %1309 = vmatpush2.xpose.msra.mxu0 0.0
    %1310 = vmatprep.subr.mxu0 0.0
    %1311 = vmatpush2.xpose.msra.mxu0 0.0
    %1312 = vmatprep.mubr.f32.mxu0 0.0
    %1313 = vmatmul.mubr.f32.gmra.mxu0 %v1244
    %v1314 = vpop.f32.mrf.mxu0
    %v1315 = vadd.f32 %v1074, %v1314
    %v1316 = vpop.f32.mrf.mxu0
    %1317 = vdwg.mxu0
    %v1318 = vsel %vm117, %v1315, -inf
    %1319 = vmax.xlane.f32.xlu0 %v1318
    %v1320 = vpop.xlane.xlu0 %1319
    %v1321 = vsub.f32 %v1315, %v1320
    %v1322 = vmul.f32 %v1321, 1.442695
    %v1323 = vpow.pop %v1322
    %v1324 = vsel %vm117, %v1323, 0.0
    %1325 = vadd.xlane.f32.xlu0 %v1324
    %v1326 = vpop.xlane.xlu0 %1325
    %v1327 = vrcp.pop %v1326
    %v1328 = vmul.f32 %v1323, %v1327
    %1329 = vrot.lane.b32.xlu0 %v108, 56
    %v1330 = vpop.permute.xlu0 %1329
    %v1333 = vsel %vm117, %v1328, 0
    %1335 = vmatprep.subr.mxu0 0.0
    %1336 = vmatpush1.msra.mxu0 0.0
    %1337 = vmatprep.subr.mxu0 0.0
    %1338 = vmatpush1.msra.mxu0 0.0
    %1339 = vmatprep.subr.mxu0 0.0
    %1340 = vmatpush1.msra.mxu0 0.0
    %1341 = vmatprep.subr.mxu0 0.0
    %1342 = vmatpush1.msra.mxu0 0.0
    %1343 = vmatprep.subr.mxu0 0.0
    %1344 = vmatpush1.msra.mxu0 0.0
    %1345 = vmatprep.subr.mxu0 0.0
    %1346 = vmatpush1.msra.mxu0 0.0
    %1347 = vmatprep.subr.mxu0 0.0
    %1348 = vmatpush1.msra.mxu0 0.0
    %1349 = vmatprep.subr.mxu0 0.0
    %1350 = vmatpush1.msra.mxu0 0.0
    %1351 = vmatprep.subr.mxu0 0.0
    %1352 = vmatpush1.msra.mxu0 0.0
    %1353 = vmatprep.subr.mxu0 0.0
    %1354 = vmatpush1.msra.mxu0 0.0
    %1355 = vmatprep.subr.mxu0 0.0
    %1356 = vmatpush1.msra.mxu0 0.0
    %1357 = vmatprep.subr.mxu0 0.0
    %1358 = vmatpush1.msra.mxu0 0.0
    %1359 = vmatprep.subr.mxu0 0.0
    %1360 = vmatpush1.msra.mxu0 0.0
    %1361 = vmatprep.subr.mxu0 0.0
    %1362 = vmatpush1.msra.mxu0 0.0
    %1363 = vmatprep.subr.mxu0 0.0
    %1364 = vmatpush1.msra.mxu0 0.0
    %1365 = vmatprep.subr.mxu0 0.0
    %1366 = vmatpush1.msra.mxu0 %v1330
    %1367 = vmatprep.subr.mxu0 0.0
    %1368 = vmatpush2.msra.mxu0 0.0
    %1369 = vmatprep.subr.mxu0 0.0
    %1370 = vmatpush2.msra.mxu0 0.0
    %1371 = vmatprep.subr.mxu0 0.0
    %1372 = vmatpush2.msra.mxu0 0.0
    %1373 = vmatprep.subr.mxu0 0.0
    %1374 = vmatpush2.msra.mxu0 0.0
    %1375 = vmatprep.subr.mxu0 0.0
    %1376 = vmatpush2.msra.mxu0 0.0
    %1377 = vmatprep.subr.mxu0 0.0
    %1378 = vmatpush2.msra.mxu0 0.0
    %1379 = vmatprep.subr.mxu0 0.0
    %1380 = vmatpush2.msra.mxu0 0.0
    %1381 = vmatprep.subr.mxu0 0.0
    %1382 = vmatpush2.msra.mxu0 0.0
    %1383 = vmatprep.subr.mxu0 0.0
    %1384 = vmatpush2.msra.mxu0 0.0
    %1385 = vmatprep.subr.mxu0 0.0
    %1386 = vmatpush2.msra.mxu0 0.0
    %1387 = vmatprep.subr.mxu0 0.0
    %1388 = vmatpush2.msra.mxu0 0.0
    %1389 = vmatprep.subr.mxu0 0.0
    %1390 = vmatpush2.msra.mxu0 0.0
    %1391 = vmatprep.subr.mxu0 0.0
    %1392 = vmatpush2.msra.mxu0 0.0
    %1393 = vmatprep.subr.mxu0 0.0
    %1394 = vmatpush2.msra.mxu0 0.0
    %1395 = vmatprep.subr.mxu0 0.0
    %1396 = vmatpush2.msra.mxu0 0.0
    %1397 = vmatprep.subr.mxu0 0.0
    %1398 = vmatpush2.msra.mxu0 0.0
    %1399 = vmatprep.mubr.f32.mxu0 0.0
    %1400 = vmatmul.mubr.f32.gmra.mxu0 %v1333
    %v1401 = vpop.f32.mrf.mxu0
    %v1402 = vadd.f32 0.0, %v1401
    %v1403 = vpop.f32.mrf.mxu0
    %1404 = vdwg.mxu0
    %v1406 = vsel %vm117, %v1402, 0
    %1408 = vmatprep.subr.mxu0 0.0
    %1409 = vmatpush1.msra.mxu0 0.0
    %1410 = vmatprep.subr.mxu0 0.0
    %1411 = vmatpush1.msra.mxu0 0.0
    %1412 = vmatprep.subr.mxu0 0.0
    %1413 = vmatpush1.msra.mxu0 0.0
    %1414 = vmatprep.subr.mxu0 0.0
    %1415 = vmatpush1.msra.mxu0 0.0
    %1416 = vmatprep.subr.mxu0 0.0
    %1417 = vmatpush1.msra.mxu0 0.0
    %1418 = vmatprep.subr.mxu0 0.0
    %1419 = vmatpush1.msra.mxu0 0.0
    %1420 = vmatprep.subr.mxu0 0.0
    %1421 = vmatpush1.msra.mxu0 0.0
    %1422 = vmatprep.subr.mxu0 0.0
    %1423 = vmatpush1.msra.mxu0 0.0
    %1424 = vmatprep.subr.mxu0 0.0
    %1425 = vmatpush1.msra.mxu0 0.0
    %1426 = vmatprep.subr.mxu0 0.0
    %1427 = vmatpush1.msra.mxu0 0.0
    %1428 = vmatprep.subr.mxu0 0.0
    %1429 = vmatpush1.msra.mxu0 0.0
    %1430 = vmatprep.subr.mxu0 0.0
    %1431 = vmatpush1.msra.mxu0 0.0
    %1432 = vmatprep.subr.mxu0 0.0
    %1433 = vmatpush1.msra.mxu0 0.0
    %1434 = vmatprep.subr.mxu0 0.0
    %1435 = vmatpush1.msra.mxu0 0.0
    %1436 = vmatprep.subr.mxu0 0.0
    %1437 = vmatpush1.msra.mxu0 0.0
    %1438 = vmatprep.subr.mxu0 0.0
    %1439 = vmatpush1.msra.mxu0 %v446
    %1440 = vmatprep.subr.mxu0 0.0
    %1441 = vmatpush2.msra.mxu0 0.0
    %1442 = vmatprep.subr.mxu0 0.0
    %1443 = vmatpush2.msra.mxu0 0.0
    %1444 = vmatprep.subr.mxu0 0.0
    %1445 = vmatpush2.msra.mxu0 0.0
    %1446 = vmatprep.subr.mxu0 0.0
    %1447 = vmatpush2.msra.mxu0 0.0
    %1448 = vmatprep.subr.mxu0 0.0
    %1449 = vmatpush2.msra.mxu0 0.0
    %1450 = vmatprep.subr.mxu0 0.0
    %1451 = vmatpush2.msra.mxu0 0.0
    %1452 = vmatprep.subr.mxu0 0.0
    %1453 = vmatpush2.msra.mxu0 0.0
    %1454 = vmatprep.subr.mxu0 0.0
    %1455 = vmatpush2.msra.mxu0 0.0
    %1456 = vmatprep.subr.mxu0 0.0
    %1457 = vmatpush2.msra.mxu0 0.0
    %1458 = vmatprep.subr.mxu0 0.0
    %1459 = vmatpush2.msra.mxu0 0.0
    %1460 = vmatprep.subr.mxu0 0.0
    %1461 = vmatpush2.msra.mxu0 0.0
    %1462 = vmatprep.subr.mxu0 0.0
    %1463 = vmatpush2.msra.mxu0 0.0
    %1464 = vmatprep.subr.mxu0 0.0
    %1465 = vmatpush2.msra.mxu0 0.0
    %1466 = vmatprep.subr.mxu0 0.0
    %1467 = vmatpush2.msra.mxu0 0.0
    %1468 = vmatprep.subr.mxu0 0.0
    %1469 = vmatpush2.msra.mxu0 0.0
    %1470 = vmatprep.subr.mxu0 0.0
    %1471 = vmatpush2.msra.mxu0 0.0
    %1472 = vmatprep.mubr.f32.mxu0 0.0
    %1473 = vmatmul.mubr.f32.gmra.mxu0 %v1406
    %v1474 = vpop.f32.mrf.mxu0
    %v1475 = vadd.f32 0.0, %v1474
    %v1476 = vpop.f32.mrf.mxu0
    %1477 = vdwg.mxu0
    %v1479 = vsel %vm117, %v1237, 0
    %1481 = vmatprep.subr.mxu0 0.0
    %1482 = vmatpush1.msra.mxu0 0.0
    %1483 = vmatprep.subr.mxu0 0.0
    %1484 = vmatpush1.msra.mxu0 0.0
    %1485 = vmatprep.subr.mxu0 0.0
    %1486 = vmatpush1.msra.mxu0 0.0
    %1487 = vmatprep.subr.mxu0 0.0
    %1488 = vmatpush1.msra.mxu0 0.0
    %1489 = vmatprep.subr.mxu0 0.0
    %1490 = vmatpush1.msra.mxu0 0.0
    %1491 = vmatprep.subr.mxu0 0.0
    %1492 = vmatpush1.msra.mxu0 0.0
    %1493 = vmatprep.subr.mxu0 0.0
    %1494 = vmatpush1.msra.mxu0 0.0
    %1495 = vmatprep.subr.mxu0 0.0
    %1496 = vmatpush1.msra.mxu0 0.0
    %1497 = vmatprep.subr.mxu0 0.0
    %1498 = vmatpush1.msra.mxu0 0.0
    %1499 = vmatprep.subr.mxu0 0.0
    %1500 = vmatpush1.msra.mxu0 0.0
    %1501 = vmatprep.subr.mxu0 0.0
    %1502 = vmatpush1.msra.mxu0 0.0
    %1503 = vmatprep.subr.mxu0 0.0
    %1504 = vmatpush1.msra.mxu0 0.0
    %1505 = vmatprep.subr.mxu0 0.0
    %1506 = vmatpush1.msra.mxu0 0.0
    %1507 = vmatprep.subr.mxu0 0.0
    %1508 = vmatpush1.msra.mxu0 0.0
    %1509 = vmatprep.subr.mxu0 0.0
    %1510 = vmatpush1.msra.mxu0 0.0
    %1511 = vmatprep.subr.mxu0 0.0
    %1512 = vmatpush1.msra.mxu0 %v280
    %1513 = vmatprep.subr.mxu0 0.0
    %1514 = vmatpush2.msra.mxu0 0.0
    %1515 = vmatprep.subr.mxu0 0.0
    %1516 = vmatpush2.msra.mxu0 0.0
    %1517 = vmatprep.subr.mxu0 0.0
    %1518 = vmatpush2.msra.mxu0 0.0
    %1519 = vmatprep.subr.mxu0 0.0
    %1520 = vmatpush2.msra.mxu0 0.0
    %1521 = vmatprep.subr.mxu0 0.0
    %1522 = vmatpush2.msra.mxu0 0.0
    %1523 = vmatprep.subr.mxu0 0.0
    %1524 = vmatpush2.msra.mxu0 0.0
    %1525 = vmatprep.subr.mxu0 0.0
    %1526 = vmatpush2.msra.mxu0 0.0
    %1527 = vmatprep.subr.mxu0 0.0
    %1528 = vmatpush2.msra.mxu0 0.0
    %1529 = vmatprep.subr.mxu0 0.0
    %1530 = vmatpush2.msra.mxu0 0.0
    %1531 = vmatprep.subr.mxu0 0.0
    %1532 = vmatpush2.msra.mxu0 0.0
    %1533 = vmatprep.subr.mxu0 0.0
    %1534 = vmatpush2.msra.mxu0 0.0
    %1535 = vmatprep.subr.mxu0 0.0
    %1536 = vmatpush2.msra.mxu0 0.0
    %1537 = vmatprep.subr.mxu0 0.0
    %1538 = vmatpush2.msra.mxu0 0.0
    %1539 = vmatprep.subr.mxu0 0.0
    %1540 = vmatpush2.msra.mxu0 0.0
    %1541 = vmatprep.subr.mxu0 0.0
    %1542 = vmatpush2.msra.mxu0 0.0
    %1543 = vmatprep.subr.mxu0 0.0
    %1544 = vmatpush2.msra.mxu0 0.0
    %1545 = vmatprep.mubr.f32.mxu0 0.0
    %1546 = vmatmul.mubr.f32.gmra.mxu0 %v1479
    %v1547 = vpop.f32.mrf.mxu0
    %v1548 = vadd.f32 %v1475, %v1547
    %v1549 = vpop.f32.mrf.mxu0
    %1550 = vdwg.mxu0
    %1551 = vrot.lane.b32.xlu0 %v112, 112
    %v1552 = vpop.permute.xlu0 %1551
    %1553 = vrot.lane.b32.xlu0 %v108, 80
    %v1554 = vpop.permute.xlu0 %1553
    %v1555 = vsel %vm117, %v1552, 0
    %v1557 = vsel %vm117, %v1554, 0
    %1559 = vmatprep.subr.mxu0 0.0
    %1560 = vmatpush1.xpose.msra.mxu0 0.0
    %1561 = vmatprep.subr.mxu0 0.0
    %1562 = vmatpush1.xpose.msra.mxu0 0.0
    %1563 = vmatprep.subr.mxu0 0.0
    %1564 = vmatpush1.xpose.msra.mxu0 0.0
    %1565 = vmatprep.subr.mxu0 0.0
    %1566 = vmatpush1.xpose.msra.mxu0 0.0
    %1567 = vmatprep.subr.mxu0 0.0
    %1568 = vmatpush1.xpose.msra.mxu0 0.0
    %1569 = vmatprep.subr.mxu0 0.0
    %1570 = vmatpush1.xpose.msra.mxu0 0.0
    %1571 = vmatprep.subr.mxu0 0.0
    %1572 = vmatpush1.xpose.msra.mxu0 0.0
    %1573 = vmatprep.subr.mxu0 0.0
    %1574 = vmatpush1.xpose.msra.mxu0 0.0
    %1575 = vmatprep.subr.mxu0 0.0
    %1576 = vmatpush1.xpose.msra.mxu0 0.0
    %1577 = vmatprep.subr.mxu0 0.0
    %1578 = vmatpush1.xpose.msra.mxu0 0.0
    %1579 = vmatprep.subr.mxu0 0.0
    %1580 = vmatpush1.xpose.msra.mxu0 0.0
    %1581 = vmatprep.subr.mxu0 0.0
    %1582 = vmatpush1.xpose.msra.mxu0 0.0
    %1583 = vmatprep.subr.mxu0 0.0
    %1584 = vmatpush1.xpose.msra.mxu0 0.0
    %1585 = vmatprep.subr.mxu0 0.0
    %1586 = vmatpush1.xpose.msra.mxu0 0.0
    %1587 = vmatprep.subr.mxu0 0.0
    %1588 = vmatpush1.xpose.msra.mxu0 0.0
    %1589 = vmatprep.subr.mxu0 0.0
    %1590 = vmatpush1.xpose.msra.mxu0 %v1557
    %1591 = vmatprep.subr.mxu0 0.0
    %1592 = vmatpush2.xpose.msra.mxu0 0.0
    %1593 = vmatprep.subr.mxu0 0.0
    %1594 = vmatpush2.xpose.msra.mxu0 0.0
    %1595 = vmatprep.subr.mxu0 0.0
    %1596 = vmatpush2.xpose.msra.mxu0 0.0
    %1597 = vmatprep.subr.mxu0 0.0
    %1598 = vmatpush2.xpose.msra.mxu0 0.0
    %1599 = vmatprep.subr.mxu0 0.0
    %1600 = vmatpush2.xpose.msra.mxu0 0.0
    %1601 = vmatprep.subr.mxu0 0.0
    %1602 = vmatpush2.xpose.msra.mxu0 0.0
    %1603 = vmatprep.subr.mxu0 0.0
    %1604 = vmatpush2.xpose.msra.mxu0 0.0
    %1605 = vmatprep.subr.mxu0 0.0
    %1606 = vmatpush2.xpose.msra.mxu0 0.0
    %1607 = vmatprep.subr.mxu0 0.0
    %1608 = vmatpush2.xpose.msra.mxu0 0.0
    %1609 = vmatprep.subr.mxu0 0.0
    %1610 = vmatpush2.xpose.msra.mxu0 0.0
    %1611 = vmatprep.subr.mxu0 0.0
    %1612 = vmatpush2.xpose.msra.mxu0 0.0
    %1613 = vmatprep.subr.mxu0 0.0
    %1614 = vmatpush2.xpose.msra.mxu0 0.0
    %1615 = vmatprep.subr.mxu0 0.0
    %1616 = vmatpush2.xpose.msra.mxu0 0.0
    %1617 = vmatprep.subr.mxu0 0.0
    %1618 = vmatpush2.xpose.msra.mxu0 0.0
    %1619 = vmatprep.subr.mxu0 0.0
    %1620 = vmatpush2.xpose.msra.mxu0 0.0
    %1621 = vmatprep.subr.mxu0 0.0
    %1622 = vmatpush2.xpose.msra.mxu0 0.0
    %1623 = vmatprep.mubr.f32.mxu0 0.0
    %1624 = vmatmul.mubr.f32.gmra.mxu0 %v1555
    %v1625 = vpop.f32.mrf.mxu0
    %v1626 = vadd.f32 %v1074, %v1625
    %v1627 = vpop.f32.mrf.mxu0
    %1628 = vdwg.mxu0
    %v1629 = vsel %vm117, %v1626, -inf
    %1630 = vmax.xlane.f32.xlu0 %v1629
    %v1631 = vpop.xlane.xlu0 %1630
    %v1632 = vsub.f32 %v1626, %v1631
    %v1633 = vmul.f32 %v1632, 1.442695
    %v1634 = vpow.pop %v1633
    %v1635 = vsel %vm117, %v1634, 0.0
    %1636 = vadd.xlane.f32.xlu0 %v1635
    %v1637 = vpop.xlane.xlu0 %1636
    %v1638 = vrcp.pop %v1637
    %v1639 = vmul.f32 %v1634, %v1638
    %1640 = vrot.lane.b32.xlu0 %v108, 48
    %v1641 = vpop.permute.xlu0 %1640
    %v1644 = vsel %vm117, %v1639, 0
    %1646 = vmatprep.subr.mxu0 0.0
    %1647 = vmatpush1.msra.mxu0 0.0
    %1648 = vmatprep.subr.mxu0 0.0
    %1649 = vmatpush1.msra.mxu0 0.0
    %1650 = vmatprep.subr.mxu0 0.0
    %1651 = vmatpush1.msra.mxu0 0.0
    %1652 = vmatprep.subr.mxu0 0.0
    %1653 = vmatpush1.msra.mxu0 0.0
    %1654 = vmatprep.subr.mxu0 0.0
    %1655 = vmatpush1.msra.mxu0 0.0
    %1656 = vmatprep.subr.mxu0 0.0
    %1657 = vmatpush1.msra.mxu0 0.0
    %1658 = vmatprep.subr.mxu0 0.0
    %1659 = vmatpush1.msra.mxu0 0.0
    %1660 = vmatprep.subr.mxu0 0.0
    %1661 = vmatpush1.msra.mxu0 0.0
    %1662 = vmatprep.subr.mxu0 0.0
    %1663 = vmatpush1.msra.mxu0 0.0
    %1664 = vmatprep.subr.mxu0 0.0
    %1665 = vmatpush1.msra.mxu0 0.0
    %1666 = vmatprep.subr.mxu0 0.0
    %1667 = vmatpush1.msra.mxu0 0.0
    %1668 = vmatprep.subr.mxu0 0.0
    %1669 = vmatpush1.msra.mxu0 0.0
    %1670 = vmatprep.subr.mxu0 0.0
    %1671 = vmatpush1.msra.mxu0 0.0
    %1672 = vmatprep.subr.mxu0 0.0
    %1673 = vmatpush1.msra.mxu0 0.0
    %1674 = vmatprep.subr.mxu0 0.0
    %1675 = vmatpush1.msra.mxu0 0.0
    %1676 = vmatprep.subr.mxu0 0.0
    %1677 = vmatpush1.msra.mxu0 %v1641
    %1678 = vmatprep.subr.mxu0 0.0
    %1679 = vmatpush2.msra.mxu0 0.0
    %1680 = vmatprep.subr.mxu0 0.0
    %1681 = vmatpush2.msra.mxu0 0.0
    %1682 = vmatprep.subr.mxu0 0.0
    %1683 = vmatpush2.msra.mxu0 0.0
    %1684 = vmatprep.subr.mxu0 0.0
    %1685 = vmatpush2.msra.mxu0 0.0
    %1686 = vmatprep.subr.mxu0 0.0
    %1687 = vmatpush2.msra.mxu0 0.0
    %1688 = vmatprep.subr.mxu0 0.0
    %1689 = vmatpush2.msra.mxu0 0.0
    %1690 = vmatprep.subr.mxu0 0.0
    %1691 = vmatpush2.msra.mxu0 0.0
    %1692 = vmatprep.subr.mxu0 0.0
    %1693 = vmatpush2.msra.mxu0 0.0
    %1694 = vmatprep.subr.mxu0 0.0
    %1695 = vmatpush2.msra.mxu0 0.0
    %1696 = vmatprep.subr.mxu0 0.0
    %1697 = vmatpush2.msra.mxu0 0.0
    %1698 = vmatprep.subr.mxu0 0.0
    %1699 = vmatpush2.msra.mxu0 0.0
    %1700 = vmatprep.subr.mxu0 0.0
    %1701 = vmatpush2.msra.mxu0 0.0
    %1702 = vmatprep.subr.mxu0 0.0
    %1703 = vmatpush2.msra.mxu0 0.0
    %1704 = vmatprep.subr.mxu0 0.0
    %1705 = vmatpush2.msra.mxu0 0.0
    %1706 = vmatprep.subr.mxu0 0.0
    %1707 = vmatpush2.msra.mxu0 0.0
    %1708 = vmatprep.subr.mxu0 0.0
    %1709 = vmatpush2.msra.mxu0 0.0
    %1710 = vmatprep.mubr.f32.mxu0 0.0
    %1711 = vmatmul.mubr.f32.gmra.mxu0 %v1644
    %v1712 = vpop.f32.mrf.mxu0
    %v1713 = vadd.f32 0.0, %v1712
    %v1714 = vpop.f32.mrf.mxu0
    %1715 = vdwg.mxu0
    %v1717 = vsel %vm117, %v1713, 0
    %1719 = vmatprep.subr.mxu0 0.0
    %1720 = vmatpush1.msra.mxu0 0.0
    %1721 = vmatprep.subr.mxu0 0.0
    %1722 = vmatpush1.msra.mxu0 0.0
    %1723 = vmatprep.subr.mxu0 0.0
    %1724 = vmatpush1.msra.mxu0 0.0
    %1725 = vmatprep.subr.mxu0 0.0
    %1726 = vmatpush1.msra.mxu0 0.0
    %1727 = vmatprep.subr.mxu0 0.0
    %1728 = vmatpush1.msra.mxu0 0.0
    %1729 = vmatprep.subr.mxu0 0.0
    %1730 = vmatpush1.msra.mxu0 0.0
    %1731 = vmatprep.subr.mxu0 0.0
    %1732 = vmatpush1.msra.mxu0 0.0
    %1733 = vmatprep.subr.mxu0 0.0
    %1734 = vmatpush1.msra.mxu0 0.0
    %1735 = vmatprep.subr.mxu0 0.0
    %1736 = vmatpush1.msra.mxu0 0.0
    %1737 = vmatprep.subr.mxu0 0.0
    %1738 = vmatpush1.msra.mxu0 0.0
    %1739 = vmatprep.subr.mxu0 0.0
    %1740 = vmatpush1.msra.mxu0 0.0
    %1741 = vmatprep.subr.mxu0 0.0
    %1742 = vmatpush1.msra.mxu0 0.0
    %1743 = vmatprep.subr.mxu0 0.0
    %1744 = vmatpush1.msra.mxu0 0.0
    %1745 = vmatprep.subr.mxu0 0.0
    %1746 = vmatpush1.msra.mxu0 0.0
    %1747 = vmatprep.subr.mxu0 0.0
    %1748 = vmatpush1.msra.mxu0 0.0
    %1749 = vmatprep.subr.mxu0 0.0
    %1750 = vmatpush1.msra.mxu0 %v758
    %1751 = vmatprep.subr.mxu0 0.0
    %1752 = vmatpush2.msra.mxu0 0.0
    %1753 = vmatprep.subr.mxu0 0.0
    %1754 = vmatpush2.msra.mxu0 0.0
    %1755 = vmatprep.subr.mxu0 0.0
    %1756 = vmatpush2.msra.mxu0 0.0
    %1757 = vmatprep.subr.mxu0 0.0
    %1758 = vmatpush2.msra.mxu0 0.0
    %1759 = vmatprep.subr.mxu0 0.0
    %1760 = vmatpush2.msra.mxu0 0.0
    %1761 = vmatprep.subr.mxu0 0.0
    %1762 = vmatpush2.msra.mxu0 0.0
    %1763 = vmatprep.subr.mxu0 0.0
    %1764 = vmatpush2.msra.mxu0 0.0
    %1765 = vmatprep.subr.mxu0 0.0
    %1766 = vmatpush2.msra.mxu0 0.0
    %1767 = vmatprep.subr.mxu0 0.0
    %1768 = vmatpush2.msra.mxu0 0.0
    %1769 = vmatprep.subr.mxu0 0.0
    %1770 = vmatpush2.msra.mxu0 0.0
    %1771 = vmatprep.subr.mxu0 0.0
    %1772 = vmatpush2.msra.mxu0 0.0
    %1773 = vmatprep.subr.mxu0 0.0
    %1774 = vmatpush2.msra.mxu0 0.0
    %1775 = vmatprep.subr.mxu0 0.0
    %1776 = vmatpush2.msra.mxu0 0.0
    %1777 = vmatprep.subr.mxu0 0.0
    %1778 = vmatpush2.msra.mxu0 0.0
    %1779 = vmatprep.subr.mxu0 0.0
    %1780 = vmatpush2.msra.mxu0 0.0
    %1781 = vmatprep.subr.mxu0 0.0
    %1782 = vmatpush2.msra.mxu0 0.0
    %1783 = vmatprep.mubr.f32.mxu0 0.0
    %1784 = vmatmul.mubr.f32.gmra.mxu0 %v1717
    %v1785 = vpop.f32.mrf.mxu0
    %v1786 = vadd.f32 0.0, %v1785
    %v1787 = vpop.f32.mrf.mxu0
    %1788 = vdwg.mxu0
    %v1789 = vadd.f32 %v1548, %v1786
    %1790 = vrot.lane.b32.xlu0 %v112, 104
    %v1791 = vpop.permute.xlu0 %1790
    %1792 = vrot.lane.b32.xlu0 %v108, 72
    %v1793 = vpop.permute.xlu0 %1792
    %v1794 = vsel %vm117, %v1791, 0
    %v1796 = vsel %vm117, %v1793, 0
    %1798 = vmatprep.subr.mxu0 0.0
    %1799 = vmatpush1.xpose.msra.mxu0 0.0
    %1800 = vmatprep.subr.mxu0 0.0
    %1801 = vmatpush1.xpose.msra.mxu0 0.0
    %1802 = vmatprep.subr.mxu0 0.0
    %1803 = vmatpush1.xpose.msra.mxu0 0.0
    %1804 = vmatprep.subr.mxu0 0.0
    %1805 = vmatpush1.xpose.msra.mxu0 0.0
    %1806 = vmatprep.subr.mxu0 0.0
    %1807 = vmatpush1.xpose.msra.mxu0 0.0
    %1808 = vmatprep.subr.mxu0 0.0
    %1809 = vmatpush1.xpose.msra.mxu0 0.0
    %1810 = vmatprep.subr.mxu0 0.0
    %1811 = vmatpush1.xpose.msra.mxu0 0.0
    %1812 = vmatprep.subr.mxu0 0.0
    %1813 = vmatpush1.xpose.msra.mxu0 0.0
    %1814 = vmatprep.subr.mxu0 0.0
    %1815 = vmatpush1.xpose.msra.mxu0 0.0
    %1816 = vmatprep.subr.mxu0 0.0
    %1817 = vmatpush1.xpose.msra.mxu0 0.0
    %1818 = vmatprep.subr.mxu0 0.0
    %1819 = vmatpush1.xpose.msra.mxu0 0.0
    %1820 = vmatprep.subr.mxu0 0.0
    %1821 = vmatpush1.xpose.msra.mxu0 0.0
    %1822 = vmatprep.subr.mxu0 0.0
    %1823 = vmatpush1.xpose.msra.mxu0 0.0
    %1824 = vmatprep.subr.mxu0 0.0
    %1825 = vmatpush1.xpose.msra.mxu0 0.0
    %1826 = vmatprep.subr.mxu0 0.0
    %1827 = vmatpush1.xpose.msra.mxu0 0.0
    %1828 = vmatprep.subr.mxu0 0.0
    %1829 = vmatpush1.xpose.msra.mxu0 %v1796
    %1830 = vmatprep.subr.mxu0 0.0
    %1831 = vmatpush2.xpose.msra.mxu0 0.0
    %1832 = vmatprep.subr.mxu0 0.0
    %1833 = vmatpush2.xpose.msra.mxu0 0.0
    %1834 = vmatprep.subr.mxu0 0.0
    %1835 = vmatpush2.xpose.msra.mxu0 0.0
    %1836 = vmatprep.subr.mxu0 0.0
    %1837 = vmatpush2.xpose.msra.mxu0 0.0
    %1838 = vmatprep.subr.mxu0 0.0
    %1839 = vmatpush2.xpose.msra.mxu0 0.0
    %1840 = vmatprep.subr.mxu0 0.0
    %1841 = vmatpush2.xpose.msra.mxu0 0.0
    %1842 = vmatprep.subr.mxu0 0.0
    %1843 = vmatpush2.xpose.msra.mxu0 0.0
    %1844 = vmatprep.subr.mxu0 0.0
    %1845 = vmatpush2.xpose.msra.mxu0 0.0
    %1846 = vmatprep.subr.mxu0 0.0
    %1847 = vmatpush2.xpose.msra.mxu0 0.0
    %1848 = vmatprep.subr.mxu0 0.0
    %1849 = vmatpush2.xpose.msra.mxu0 0.0
    %1850 = vmatprep.subr.mxu0 0.0
    %1851 = vmatpush2.xpose.msra.mxu0 0.0
    %1852 = vmatprep.subr.mxu0 0.0
    %1853 = vmatpush2.xpose.msra.mxu0 0.0
    %1854 = vmatprep.subr.mxu0 0.0
    %1855 = vmatpush2.xpose.msra.mxu0 0.0
    %1856 = vmatprep.subr.mxu0 0.0
    %1857 = vmatpush2.xpose.msra.mxu0 0.0
    %1858 = vmatprep.subr.mxu0 0.0
    %1859 = vmatpush2.xpose.msra.mxu0 0.0
    %1860 = vmatprep.subr.mxu0 0.0
    %1861 = vmatpush2.xpose.msra.mxu0 0.0
    %1862 = vmatprep.mubr.f32.mxu0 0.0
    %1863 = vmatmul.mubr.f32.gmra.mxu0 %v1794
    %v1864 = vpop.f32.mrf.mxu0
    %v1865 = vadd.f32 %v1074, %v1864
    %v1866 = vpop.f32.mrf.mxu0
    %1867 = vdwg.mxu0
    %v1868 = vsel %vm117, %v1865, -inf
    %1869 = vmax.xlane.f32.xlu0 %v1868
    %v1870 = vpop.xlane.xlu0 %1869
    %v1871 = vsub.f32 %v1865, %v1870
    %v1872 = vmul.f32 %v1871, 1.442695
    %v1873 = vpow.pop %v1872
    %v1874 = vsel %vm117, %v1873, 0.0
    %1875 = vadd.xlane.f32.xlu0 %v1874
    %v1876 = vpop.xlane.xlu0 %1875
    %v1877 = vrcp.pop %v1876
    %v1878 = vmul.f32 %v1873, %v1877
    %1879 = vrot.lane.b32.xlu0 %v108, 40
    %v1880 = vpop.permute.xlu0 %1879
    %v1883 = vsel %vm117, %v1878, 0
    %1885 = vmatprep.subr.mxu0 0.0
    %1886 = vmatpush1.msra.mxu0 0.0
    %1887 = vmatprep.subr.mxu0 0.0
    %1888 = vmatpush1.msra.mxu0 0.0
    %1889 = vmatprep.subr.mxu0 0.0
    %1890 = vmatpush1.msra.mxu0 0.0
    %1891 = vmatprep.subr.mxu0 0.0
    %1892 = vmatpush1.msra.mxu0 0.0
    %1893 = vmatprep.subr.mxu0 0.0
    %1894 = vmatpush1.msra.mxu0 0.0
    %1895 = vmatprep.subr.mxu0 0.0
    %1896 = vmatpush1.msra.mxu0 0.0
    %1897 = vmatprep.subr.mxu0 0.0
    %1898 = vmatpush1.msra.mxu0 0.0
    %1899 = vmatprep.subr.mxu0 0.0
    %1900 = vmatpush1.msra.mxu0 0.0
    %1901 = vmatprep.subr.mxu0 0.0
    %1902 = vmatpush1.msra.mxu0 0.0
    %1903 = vmatprep.subr.mxu0 0.0
    %1904 = vmatpush1.msra.mxu0 0.0
    %1905 = vmatprep.subr.mxu0 0.0
    %1906 = vmatpush1.msra.mxu0 0.0
    %1907 = vmatprep.subr.mxu0 0.0
    %1908 = vmatpush1.msra.mxu0 0.0
    %1909 = vmatprep.subr.mxu0 0.0
    %1910 = vmatpush1.msra.mxu0 0.0
    %1911 = vmatprep.subr.mxu0 0.0
    %1912 = vmatpush1.msra.mxu0 0.0
    %1913 = vmatprep.subr.mxu0 0.0
    %1914 = vmatpush1.msra.mxu0 0.0
    %1915 = vmatprep.subr.mxu0 0.0
    %1916 = vmatpush1.msra.mxu0 %v1880
    %1917 = vmatprep.subr.mxu0 0.0
    %1918 = vmatpush2.msra.mxu0 0.0
    %1919 = vmatprep.subr.mxu0 0.0
    %1920 = vmatpush2.msra.mxu0 0.0
    %1921 = vmatprep.subr.mxu0 0.0
    %1922 = vmatpush2.msra.mxu0 0.0
    %1923 = vmatprep.subr.mxu0 0.0
    %1924 = vmatpush2.msra.mxu0 0.0
    %1925 = vmatprep.subr.mxu0 0.0
    %1926 = vmatpush2.msra.mxu0 0.0
    %1927 = vmatprep.subr.mxu0 0.0
    %1928 = vmatpush2.msra.mxu0 0.0
    %1929 = vmatprep.subr.mxu0 0.0
    %1930 = vmatpush2.msra.mxu0 0.0
    %1931 = vmatprep.subr.mxu0 0.0
    %1932 = vmatpush2.msra.mxu0 0.0
    %1933 = vmatprep.subr.mxu0 0.0
    %1934 = vmatpush2.msra.mxu0 0.0
    %1935 = vmatprep.subr.mxu0 0.0
    %1936 = vmatpush2.msra.mxu0 0.0
    %1937 = vmatprep.subr.mxu0 0.0
    %1938 = vmatpush2.msra.mxu0 0.0
    %1939 = vmatprep.subr.mxu0 0.0
    %1940 = vmatpush2.msra.mxu0 0.0
    %1941 = vmatprep.subr.mxu0 0.0
    %1942 = vmatpush2.msra.mxu0 0.0
    %1943 = vmatprep.subr.mxu0 0.0
    %1944 = vmatpush2.msra.mxu0 0.0
    %1945 = vmatprep.subr.mxu0 0.0
    %1946 = vmatpush2.msra.mxu0 0.0
    %1947 = vmatprep.subr.mxu0 0.0
    %1948 = vmatpush2.msra.mxu0 0.0
    %1949 = vmatprep.mubr.f32.mxu0 0.0
    %1950 = vmatmul.mubr.f32.gmra.mxu0 %v1883
    %v1951 = vpop.f32.mrf.mxu0
    %v1952 = vadd.f32 0.0, %v1951
    %v1953 = vpop.f32.mrf.mxu0
    %1954 = vdwg.mxu0
    %v1956 = vsel %vm117, %v1952, 0
    %1958 = vmatprep.subr.mxu0 0.0
    %1959 = vmatpush1.msra.mxu0 0.0
    %1960 = vmatprep.subr.mxu0 0.0
    %1961 = vmatpush1.msra.mxu0 0.0
    %1962 = vmatprep.subr.mxu0 0.0
    %1963 = vmatpush1.msra.mxu0 0.0
    %1964 = vmatprep.subr.mxu0 0.0
    %1965 = vmatpush1.msra.mxu0 0.0
    %1966 = vmatprep.subr.mxu0 0.0
    %1967 = vmatpush1.msra.mxu0 0.0
    %1968 = vmatprep.subr.mxu0 0.0
    %1969 = vmatpush1.msra.mxu0 0.0
    %1970 = vmatprep.subr.mxu0 0.0
    %1971 = vmatpush1.msra.mxu0 0.0
    %1972 = vmatprep.subr.mxu0 0.0
    %1973 = vmatpush1.msra.mxu0 0.0
    %1974 = vmatprep.subr.mxu0 0.0
    %1975 = vmatpush1.msra.mxu0 0.0
    %1976 = vmatprep.subr.mxu0 0.0
    %1977 = vmatpush1.msra.mxu0 0.0
    %1978 = vmatprep.subr.mxu0 0.0
    %1979 = vmatpush1.msra.mxu0 0.0
    %1980 = vmatprep.subr.mxu0 0.0
    %1981 = vmatpush1.msra.mxu0 0.0
    %1982 = vmatprep.subr.mxu0 0.0
    %1983 = vmatpush1.msra.mxu0 0.0
    %1984 = vmatprep.subr.mxu0 0.0
    %1985 = vmatpush1.msra.mxu0 0.0
    %1986 = vmatprep.subr.mxu0 0.0
    %1987 = vmatpush1.msra.mxu0 0.0
    %1988 = vmatprep.subr.mxu0 0.0
    %1989 = vmatpush1.msra.mxu0 %v998
    %1990 = vmatprep.subr.mxu0 0.0
    %1991 = vmatpush2.msra.mxu0 0.0
    %1992 = vmatprep.subr.mxu0 0.0
    %1993 = vmatpush2.msra.mxu0 0.0
    %1994 = vmatprep.subr.mxu0 0.0
    %1995 = vmatpush2.msra.mxu0 0.0
    %1996 = vmatprep.subr.mxu0 0.0
    %1997 = vmatpush2.msra.mxu0 0.0
    %1998 = vmatprep.subr.mxu0 0.0
    %1999 = vmatpush2.msra.mxu0 0.0
    %2000 = vmatprep.subr.mxu0 0.0
    %2001 = vmatpush2.msra.mxu0 0.0
    %2002 = vmatprep.subr.mxu0 0.0
    %2003 = vmatpush2.msra.mxu0 0.0
    %2004 = vmatprep.subr.mxu0 0.0
    %2005 = vmatpush2.msra.mxu0 0.0
    %2006 = vmatprep.subr.mxu0 0.0
    %2007 = vmatpush2.msra.mxu0 0.0
    %2008 = vmatprep.subr.mxu0 0.0
    %2009 = vmatpush2.msra.mxu0 0.0
    %2010 = vmatprep.subr.mxu0 0.0
    %2011 = vmatpush2.msra.mxu0 0.0
    %2012 = vmatprep.subr.mxu0 0.0
    %2013 = vmatpush2.msra.mxu0 0.0
    %2014 = vmatprep.subr.mxu0 0.0
    %2015 = vmatpush2.msra.mxu0 0.0
    %2016 = vmatprep.subr.mxu0 0.0
    %2017 = vmatpush2.msra.mxu0 0.0
    %2018 = vmatprep.subr.mxu0 0.0
    %2019 = vmatpush2.msra.mxu0 0.0
    %2020 = vmatprep.subr.mxu0 0.0
    %2021 = vmatpush2.msra.mxu0 0.0
    %2022 = vmatprep.mubr.f32.mxu0 0.0
    %2023 = vmatmul.mubr.f32.gmra.mxu0 %v1956
    %v2024 = vpop.f32.mrf.mxu0
    %v2025 = vadd.f32 0.0, %v2024
    %v2026 = vpop.f32.mrf.mxu0
    %2027 = vdwg.mxu0
    %v2028 = vadd.f32 %v1789, %v2025
    %v2029 = vld [vmem:[%s3 + $0x20] sm:$0xff]
    %v2030 = vld [vmem:[%s3 + $0x28] sm:$0xff]
    %v2031 = vld [vmem:[%s3 + $0x30] sm:$0xff]
    %v2032 = vld [vmem:[%s3 + $0x38] sm:$0xff]
    %v2033 = vld [vmem:[%s3 + $0x40] sm:$0xf]
    %v2034 = vlaneseq
    %v2035 = vshrl.u32 %v2034, 7
    %v2036 = vsub.s32 0, %v2035
    %v2037 = vrot.slane %v2033, %v2036
    %v2038 = vadd.f32 %v1072, %v2037
    %v2039 = vadd.f32 %v2028, %v2037
    %v2041 = vsel %vm29, %v2038, 0
    %v2044 = vsel %vm29, %v2039, 0
    %2046 = vmatprep.subr.mxu0 0.0
    %2047 = vmatpush1.msra.mxu0 0.0
    %2048 = vmatprep.subr.mxu0 0.0
    %2049 = vmatpush1.msra.mxu0 0.0
    %2050 = vmatprep.subr.mxu0 0.0
    %2051 = vmatpush1.msra.mxu0 0.0
    %2052 = vmatprep.subr.mxu0 0.0
    %2053 = vmatpush1.msra.mxu0 0.0
    %2054 = vmatprep.subr.mxu0 0.0
    %2055 = vmatpush1.msra.mxu0 0.0
    %2056 = vmatprep.subr.mxu0 0.0
    %2057 = vmatpush1.msra.mxu0 0.0
    %2058 = vmatprep.subr.mxu0 0.0
    %2059 = vmatpush1.msra.mxu0 0.0
    %2060 = vmatprep.subr.mxu0 0.0
    %2061 = vmatpush1.msra.mxu0 0.0
    %2062 = vmatprep.subr.mxu0 0.0
    %2063 = vmatpush1.msra.mxu0 0.0
    %2064 = vmatprep.subr.mxu0 0.0
    %2065 = vmatpush1.msra.mxu0 0.0
    %2066 = vmatprep.subr.mxu0 0.0
    %2067 = vmatpush1.msra.mxu0 0.0
    %2068 = vmatprep.subr.mxu0 0.0
    %2069 = vmatpush1.msra.mxu0 0.0
    %2070 = vmatprep.subr.mxu0 0.0
    %2071 = vmatpush1.msra.mxu0 %v2032
    %2072 = vmatprep.subr.mxu0 0.0
    %2073 = vmatpush1.msra.mxu0 %v2031
    %2074 = vmatprep.subr.mxu0 0.0
    %2075 = vmatpush1.msra.mxu0 %v2030
    %2076 = vmatprep.subr.mxu0 0.0
    %2077 = vmatpush1.msra.mxu0 %v2029
    %2078 = vmatprep.subr.mxu0 0.0
    %2079 = vmatpush2.msra.mxu0 0.0
    %2080 = vmatprep.subr.mxu0 0.0
    %2081 = vmatpush2.msra.mxu0 0.0
    %2082 = vmatprep.subr.mxu0 0.0
    %2083 = vmatpush2.msra.mxu0 0.0
    %2084 = vmatprep.subr.mxu0 0.0
    %2085 = vmatpush2.msra.mxu0 0.0
    %2086 = vmatprep.subr.mxu0 0.0
    %2087 = vmatpush2.msra.mxu0 0.0
    %2088 = vmatprep.subr.mxu0 0.0
    %2089 = vmatpush2.msra.mxu0 0.0
    %2090 = vmatprep.subr.mxu0 0.0
    %2091 = vmatpush2.msra.mxu0 0.0
    %2092 = vmatprep.subr.mxu0 0.0
    %2093 = vmatpush2.msra.mxu0 0.0
    %2094 = vmatprep.subr.mxu0 0.0
    %2095 = vmatpush2.msra.mxu0 0.0
    %2096 = vmatprep.subr.mxu0 0.0
    %2097 = vmatpush2.msra.mxu0 0.0
    %2098 = vmatprep.subr.mxu0 0.0
    %2099 = vmatpush2.msra.mxu0 0.0
    %2100 = vmatprep.subr.mxu0 0.0
    %2101 = vmatpush2.msra.mxu0 0.0
    %2102 = vmatprep.subr.mxu0 0.0
    %2103 = vmatpush2.msra.mxu0 0.0
    %2104 = vmatprep.subr.mxu0 0.0
    %2105 = vmatpush2.msra.mxu0 0.0
    %2106 = vmatprep.subr.mxu0 0.0
    %2107 = vmatpush2.msra.mxu0 0.0
    %2108 = vmatprep.subr.mxu0 0.0
    %2109 = vmatpush2.msra.mxu0 0.0
    %2110 = vmatprep.mubr.f32.mxu0 0.0
    %2111 = vmatmul.mubr.f32.gmra.mxu0 %v2041
    %v2112 = vpop.f32.mrf.mxu0
    %v2113 = vadd.f32 0.0, %v2112
    %v2114 = vpop.f32.mrf.mxu0
    %2115 = vmatprep.mubr.f32.mxu0 0.0
    %2116 = vmatmul.mubr.f32.gmra.mxu0 %v2044
    %v2117 = vpop.f32.mrf.mxu0
    %v2118 = vadd.f32 0.0, %v2117
    %v2119 = vpop.f32.mrf.mxu0
    %2120 = vdwg.mxu0
    %v2121 = vadd.f32 %v18, %v2113
    %v2122 = vadd.f32 %v19, %v2118
    %v2123 = vlaneseq
    %v2124 = vshrl.u32 %v2123, 7
    %v2125 = vsub.s32 1, %v2124
    %v2126 = vrot.slane %v2033, %v2125
    %v2127 = vadd.f32 %v2121, %v2126
    %v2128 = vadd.f32 %v2122, %v2126
    %v2129 = vsel %vm29, %v2127, 0.0
    %2130 = vadd.xlane.f32.xlu0 %v2129
    %v2131 = vpop.xlane.xlu0 %2130
    %v2132 = vsel %vm29, %v2128, 0.0
    %2133 = vadd.xlane.f32.xlu0 %v2132
    %v2134 = vpop.xlane.xlu0 %2133
    %v2135 = vrcp.pop 32.0
    %v2136 = vmul.f32 %v2131, %v2135
    %v2137 = vmul.f32 %v2134, %v2135
    %v2138 = vsub.f32 %v2127, %v2136
    %v2139 = vsub.f32 %v2128, %v2137
    %v2140 = vmul.f32 %v2138, %v2138
    %v2141 = vmul.f32 %v2139, %v2139
    %v2142 = vsel %vm29, %v2140, 0.0
    %2143 = vadd.xlane.f32.xlu0 %v2142
    %v2144 = vpop.xlane.xlu0 %2143
    %v2145 = vsel %vm29, %v2141, 0.0
    %2146 = vadd.xlane.f32.xlu0 %v2145
    %v2147 = vpop.xlane.xlu0 %2146
    %v2148 = vmul.f32 %v2144, %v2135
    %v2149 = vmul.f32 %v2147, %v2135
    %v2150 = vadd.f32 %v2148, 1e-05
    %v2151 = vadd.f32 %v2149, 1e-05
    %v2152 = vrsqrt.pop %v2150
    %v2153 = vrsqrt.pop %v2151
    %v2154 = vmul.f32 %v2138, %v2152
    %v2155 = vmul.f32 %v2139, %v2153
    %v2156 = vlaneseq
    %v2157 = vshrl.u32 %v2156, 7
    %v2158 = vsub.s32 2, %v2157
    %v2159 = vrot.slane %v2033, %v2158
    %v2160 = vmul.f32 %v2154, %v2159
    %v2161 = vmul.f32 %v2155, %v2159
    %v2162 = vlaneseq
    %v2163 = vshrl.u32 %v2162, 7
    %v2164 = vsub.s32 3, %v2163
    %v2165 = vrot.slane %v2033, %v2164
    %v2166 = vadd.f32 %v2160, %v2165
    %v2167 = vadd.f32 %v2161, %v2165
    %2168 = vst.msk [vmem:[#allocation2] sm:$0xff] %vm29, %v2166
    %2169 = vst.msk [vmem:[#allocation2 + $0x8] sm:$0xff] %vm29, %v2167
    // Predicated region
    $region18: #{tpu_custom_call.1} parent=1 // pred_check
      _
    $region19: #{tpu_custom_call.1} parent=1 // pred_check_branch
      %2171 = sbr.rel (0) target = $region21
    $region20: #{tpu_custom_call.1} parent=1 // pred_region
      %s2173 = ssub.s32 256, 256
      %2174 = vsyncadd [#allocation3], %s2173
      %s2175 = sshll.u32 [#allocation2], 4
      %s2176 = int_to_ptr.vmem [resolvable:$true] %s2175
      %2181 = dma.vmem_to_hbm [thread:$0]  %s2176, 256, %s4, [#allocation3], 128, 128, 8
    $region21: #{tpu_custom_call.1} parent=1 // pred_fallthru
      _
    // Predicated region
    $region22: #{tpu_custom_call.1} parent=1 // pred_check
      _
    $region23: #{tpu_custom_call.1} parent=1 // pred_check_branch
      %2183 = sbr.rel (0) target = $region25
    $region24: #{tpu_custom_call.1} parent=1 // pred_region
      %2184 = dma.done [#allocation3], 256
    $region25: #{tpu_custom_call.1} parent=1 // pred_fallthru
      _
    %2185 = vsyncpa [#allocation3], 1

</llo_original>
